<compile_context>
chip_gen: v6e
topology: v6e:2x2x1
jax: 0.10.0
libtpu: 0.0.40
codegen_flags: <defaults>
</compile_context>

<pallas_src>
import math
import jax
import jax.numpy as jnp
from jax import lax
from jax.experimental import pallas as pl
from jax.experimental.pallas import tpu as pltpu

F = 32            # num_features (channels per irrep)
N = 8             # nodes per graph
E = 16            # edges per graph
GB = 4            # graphs per grid step (raise for real workloads; keep the
                  # per-step block well under v7x's 64 MiB VMEM)
LOG_N, LOG_E = 3, 4
assert (1 << LOG_N) == N and (1 << LOG_E) == E     # power-of-two => shift/mask

_F32 = jnp.float32
F4, F5 = 4 * F, 5 * F          # 128, 160
BN, BE = GB * N, GB * E        # rows per step: nodes / edges


def _silu(x):
    return x * lax.logistic(x)


# ----------------------------------------------------------------------------
# Kernel: one grid step processes GB graphs (scatter-add, o3.Linear mixing,
# dense layers, channel-wise tensor products tp1/tp2, softmax, SiLU gating,
# residual adds) fully fused.
# ----------------------------------------------------------------------------
def update_kernel(idx_ref, node_ref, edge_ref, w1_ref, w2_ref, wls_ref, b_ref,
                  out_ref):
    # ---- fused scatter(src, index=j) for GB graphs x 5 feature blocks -------
    # Block-diagonal one-hot (GB*N, GB*E) applied to lane-packed edges.
    rows = lax.broadcasted_iota(jnp.int32, (BN, BE), 0)
    cols = lax.broadcasted_iota(jnp.int32, (BN, BE), 1)
    same_graph = (rows >> LOG_N) == (cols >> LOG_E)
    hit = (rows & (N - 1)) == idx_ref[0]                 # idx is (1, BE)
    onehot = (same_graph & hit).astype(_F32)
    agg = jnp.dot(onehot, edge_ref[...], preferred_element_type=_F32)  # (BN,5F)

    # ---- outt (l=0 & l=1) + outs: ONE block-diagonal matmul -----------------
    # bias row 0 is zero on the T columns and bos on the S columns; SiLU is
    # applied to the S columns only via a lane-mask select (dropout p=0).
    u = jnp.dot(agg, w1_ref[...], preferred_element_type=_F32) + b_ref[0:1, :]
    is_s = lax.broadcasted_iota(jnp.int32, (BN, F5), 1) >= F4
    ts = node_ref[...] + u * jnp.where(is_s, lax.logistic(u), 1.0)   # (BN,5F)

    # ---- Tensorproduct_Attention -------------------------------------------
    # Q/K/V equivariant linears + lvs gate: ONE (BN,5F)@(5F,13F) matmul.
    qkvg = jnp.dot(ts, w2_ref[...], preferred_element_type=_F32)     # (BN,13F)
    qk = qkvg[:, 0:F4] * qkvg[:, F4:2 * F4]              # tp1 channel products

    # tp1 channel sum + ls projection fused: qk @ [Wls;Wls;Wls;Wls]*c2.
    z = jnp.dot(qk, wls_ref[...], preferred_element_type=_F32) \
        + b_ref[1:2, 0:2 * F]
    z = z - jnp.max(z, axis=-1, keepdims=True)
    ez = jnp.exp(z)
    p = ez * pl.reciprocal(jnp.sum(ez, axis=-1, keepdims=True), approx=True)
    su, sd = p[:, 0:F], p[:, F:2 * F]

    # tp2 (channel-wise 0 x l -> l): per-channel weights [w2s|w2v|w2v|w2v]
    # live in bias row 3; V slab is qkvg cols [8F, 12F).
    sd4 = jnp.concatenate([sd, sd, sd, sd], axis=1)                   # (BN,4F)
    upd_t = sd4 * b_ref[3:4, 0:F4] * qkvg[:, 2 * F4:3 * F4]

    # lvs gate on scalar features (g = S @ Wlvs came out of the fused matmul).
    g = qkvg[:, 3 * F4:3 * F4 + F] + b_ref[2:3, 0:F]
    upd_s = su * _silu(g)

    # direct slice stores: 128-lane aligned T slab, then the 32-lane S slab.
    out_ref[:, 0:F4] = ts[:, 0:F4] + upd_t
    out_ref[:, F4:F5] = ts[:, F4:F5] + upd_s


# ----------------------------------------------------------------------------
# Host-side parameter construction and packing
# ----------------------------------------------------------------------------
def make_params(key):
    """Deterministic synthetic parameters (xavier-uniform style), unfolded."""
    def xavier(k, shape):
        fan_in, fan_out = shape[0], shape[1]
        lim = math.sqrt(6.0 / (fan_in + fan_out))
        return jax.random.uniform(k, shape, _F32, -lim, lim)

    ks = jax.random.split(key, 16)
    return {
        "Wo0": xavier(ks[0], (F, F)),        # outt, l=0 path
        "Wo1": xavier(ks[1], (F, F)),        # outt, l=1 path
        "Wos": xavier(ks[2], (F, F)),        # outs weight
        "bos": jnp.zeros((1, F), _F32),
        "Wq0": xavier(ks[3], (F, F)),
        "Wq1": xavier(ks[4], (F, F)),
        "Wk0": xavier(ks[5], (F, F)),
        "Wk1": xavier(ks[6], (F, F)),
        "Wv0": xavier(ks[7], (F, F)),
        "Wv1": xavier(ks[8], (F, F)),
        "Wls": xavier(ks[9], (F, 2 * F)),
        "bls": jnp.zeros((1, 2 * F), _F32),
        "Wlvs": xavier(ks[10], (F, F)),
        "blvs": jnp.zeros((1, F), _F32),
        "w2s": jax.random.normal(ks[11], (1, F), _F32),   # tp2 l=0 path
        "w2v": jax.random.normal(ks[12], (1, F), _F32),   # tp2 l=1 path
    }


def pack_params(p):
    """Fold norm constants and pack into four slabs for the kernel.

    Column/row layout everywhere is [T0 | T1_m0 | T1_m1 | T1_m2 | S].
    """
    inv = 1.0 / math.sqrt(F)        # o3.Linear fan-in norm
    c2 = 1.0 / math.sqrt(2.0)       # tp1 path-sum norm (folded into Wls)
    q3 = 3.0 ** -0.25               # sqrt of tp1 l=1 CG norm, split on Wq1/Wk1

    # W1: blockdiag(Wo0/sqrt(F), Wo1/sqrt(F) x3, Wos) -> fused outt + outs.
    w1 = jnp.zeros((F5, F5), _F32)
    for i, blk in enumerate([p["Wo0"] * inv, p["Wo1"] * inv, p["Wo1"] * inv,
                             p["Wo1"] * inv, p["Wos"]]):
        w1 = w1.at[i * F:(i + 1) * F, i * F:(i + 1) * F].set(blk)

    # W2: (5F, 13F), output columns [Q0 Q1m* | K0 K1m* | V0 V1m* | g].
    w2 = jnp.zeros((F5, 13 * F), _F32)
    w2 = w2.at[0:F, 0:F].set(p["Wq0"] * inv)
    w2 = w2.at[0:F, 4 * F:5 * F].set(p["Wk0"] * inv)
    w2 = w2.at[0:F, 8 * F:9 * F].set(p["Wv0"] * inv)
    for m in range(3):
        r = (1 + m) * F
        w2 = w2.at[r:r + F, (1 + m) * F:(2 + m) * F].set(p["Wq1"] * q3 * inv)
        w2 = w2.at[r:r + F, (5 + m) * F:(6 + m) * F].set(p["Wk1"] * q3 * inv)
        w2 = w2.at[r:r + F, (9 + m) * F:(10 + m) * F].set(p["Wv1"] * inv)
    w2 = w2.at[4 * F:5 * F, 12 * F:13 * F].set(p["Wlvs"])

    # Wls4: 4x row-stacked Wls (with 1/sqrt(2)) -> fuses tp1 channel sum + ls.
    wls4 = jnp.concatenate([p["Wls"] * c2] * 4, axis=0)               # (4F,2F)

    # bias / per-channel-weight slab (8, 5F).
    b = jnp.zeros((8, F5), _F32)
    b = b.at[0, 4 * F:5 * F].set(p["bos"][0])       # bos on S columns only
    b = b.at[1, 0:2 * F].set(p["bls"][0])
    b = b.at[2, 0:F].set(p["blvs"][0])
    b = b.at[3, 0:F].set(p["w2s"][0])               # w2row = [w2s|w2v|w2v|w2v]
    for m in range(3):
        b = b.at[3, (1 + m) * F:(2 + m) * F].set(p["w2v"][0])

    return {"w1": w1, "w2": w2, "wls4": wls4, "bias": b}


# ----------------------------------------------------------------------------
# pallas_call wrapper: batched over G graphs, grid over blocks of GB graphs.
# ----------------------------------------------------------------------------
def _pallas_update(packed, idx, node_in, edge_in):
    total_nodes = node_in.shape[0]
    steps = total_nodes // (GB * N)

    def resident(shape):            # weight slabs stay put across the grid
        return pl.BlockSpec(shape, lambda g: (0, 0))

    return pl.pallas_call(
        update_kernel,
        out_shape=jax.ShapeDtypeStruct((total_nodes, F5), _F32),
        grid=(steps,),
        in_specs=[
            pl.BlockSpec((1, 1, BE), lambda g: (g, 0, 0)),   # edge->node index
            pl.BlockSpec((BN, F5), lambda g: (g, 0)),        # node slab
            pl.BlockSpec((BE, F5), lambda g: (g, 0)),        # edge slab
            resident((F5, F5)),                              # W1
            resident((F5, 13 * F)),                          # W2 (QKV + lvs)
            resident((F4, 2 * F)),                           # Wls4
            resident((8, F5)),                               # biases / tp2 w
        ],
        out_specs=pl.BlockSpec((BN, F5), lambda g: (g, 0)),
        compiler_params=pltpu.CompilerParams(
            dimension_semantics=("parallel",)),
    )(idx, node_in, edge_in, packed["w1"], packed["w2"], packed["wls4"],
      packed["bias"])


@jax.jit
def update_forward(packed, T0, T1, S, mijt0, mijt1, mijs, index):
    """Batched Update forward.  All graph tensors carry a leading G axis."""
    G = T0.shape[0]
    assert G % GB == 0, "batch of graphs must be a multiple of GB"
    # lane-dense packing [T0 | T1 | S] -- column concats only, no transposes.
    node_in = jnp.concatenate([T0, T1, S], axis=-1).reshape(G * N, F5)
    edge_in = jnp.concatenate([mijt0, mijt1, mijs], axis=-1).reshape(G * E, F5)
    idx = index[:, 1, :].astype(jnp.int32).reshape(G // GB, 1, BE)

    out = _pallas_update(packed, idx, node_in, edge_in).reshape(G, N, F5)
    return out[..., 0:F], out[..., F:4 * F], out[..., 4 * F:F5]   # T0, T1, S


# ----------------------------------------------------------------------------
# Pure-JAX reference (original unfolded math, single graph) for checking
# ----------------------------------------------------------------------------
def reference_forward(p, T0, T1, S, mijt0, mijt1, mijs, index):
    inv = 1.0 / math.sqrt(F)
    j = index[1]
    onehot = (jnp.arange(N)[:, None] == j[None, :]).astype(_F32)
    agg_t0, agg_t1, agg_s = onehot @ mijt0, onehot @ mijt1, onehot @ mijs

    def silu(x):
        return x * jax.nn.sigmoid(x)

    def lin1(x1, W):
        return jnp.concatenate(
            [x1[:, m * F:(m + 1) * F] @ W * inv for m in range(3)], axis=-1)

    ut0 = agg_t0 @ p["Wo0"] * inv
    ut1 = lin1(agg_t1, p["Wo1"])
    us = silu(agg_s @ p["Wos"] + p["bos"])
    T0, T1, S = T0 + ut0, T1 + ut1, S + us

    def eq_lin(x0, x1, W0, W1):
        return x0 @ W0 * inv, lin1(x1, W1)

    q0, q1 = eq_lin(T0, T1, p["Wq0"], p["Wq1"])
    k0, k1 = eq_lin(T0, T1, p["Wk0"], p["Wk1"])
    v0, v1 = eq_lin(T0, T1, p["Wv0"], p["Wv1"])

    dot1 = sum(q1[:, m * F:(m + 1) * F] * k1[:, m * F:(m + 1) * F]
               for m in range(3)) / math.sqrt(3.0)
    s_scalar = (q0 * k0 + dot1) / math.sqrt(2.0)
    pz = jax.nn.softmax(s_scalar @ p["Wls"] + p["bls"], axis=-1)
    su, sd = pz[:, :F], pz[:, F:]
    tu0 = p["w2s"] * sd * v0
    tu1 = jnp.concatenate(
        [p["w2v"] * sd * v1[:, m * F:(m + 1) * F] for m in range(3)], axis=-1)
    g = S @ p["Wlvs"] + p["blvs"]
    us2 = su * silu(g)
    return T0 + tu0, T1 + tu1, S + us2


if __name__ == "__main__":
    key = jax.random.PRNGKey(0)
    kp, kd = jax.random.split(key)

    params = make_params(kp)
    packed = pack_params(params)

    G = 16                                        # batch of independent graphs
    ks = jax.random.split(kd, 8)
    T0 = jax.random.normal(ks[0], (G, N, F), _F32)
    T1 = jax.random.normal(ks[1], (G, N, 3 * F), _F32)
    S = jax.random.normal(ks[2], (G, N, F), _F32)
    mijt0 = jax.random.normal(ks[3], (G, E, F), _F32)
    mijt1 = jax.random.normal(ks[4], (G, E, 3 * F), _F32)
    mijs = jax.random.normal(ks[5], (G, E, F), _F32)
    index = jnp.stack([jax.random.randint(ks[6], (G, E), 0, N),
                       jax.random.randint(ks[7], (G, E), 0, N)], axis=1)

    T0_out, T1_out, S_out = update_forward(
        packed, T0, T1, S, mijt0, mijt1, mijs, index)
    jax.block_until_ready((T0_out, T1_out, S_out))

    assert T0_out.shape == (G, N, F) and T1_out.shape == (G, N, 3 * F) \
        and S_out.shape == (G, N, F)
    assert bool(jnp.all(jnp.isfinite(T0_out))) \
        and bool(jnp.all(jnp.isfinite(T1_out))) \
        and bool(jnp.all(jnp.isfinite(S_out)))

    # correctness vs. unfolded pure-JAX reference (tolerance covers the approx
    # reciprocal in the softmax and constant-folding rounding).
    ref = jax.vmap(lambda t0, t1, s, m0, m1, ms, ix: reference_forward(
        params, t0, t1, s, m0, m1, ms, ix))
    rT0, rT1, rS = ref(T0, T1, S, mijt0, mijt1, mijs, index)
    err = max(float(jnp.max(jnp.abs(T0_out - rT0))),
              float(jnp.max(jnp.abs(T1_out - rT1))),
              float(jnp.max(jnp.abs(S_out - rS))))
    assert err < 5e-2, f"mismatch vs reference: {err}"

    print("KERNEL_OK")
</pallas_src>

<mosaic_0001>
module attributes {stable_mosaic.version = 11 : i64} {
  func.func @update_kernel(%arg0: i32, %arg1: memref<1x1x64xi32, #tpu.memory_space<vmem>>, %arg2: memref<32x160xf32, #tpu.memory_space<vmem>>, %arg3: memref<64x160xf32, #tpu.memory_space<vmem>>, %arg4: memref<160x160xf32, #tpu.memory_space<vmem>>, %arg5: memref<160x416xf32, #tpu.memory_space<vmem>>, %arg6: memref<128x64xf32, #tpu.memory_space<vmem>>, %arg7: memref<8x160xf32, #tpu.memory_space<vmem>>, %arg8: memref<32x160xf32, #tpu.memory_space<vmem>>) attributes {dimension_semantics = [#tpu.dimension_semantics<parallel>], iteration_bounds = array<i64: 4>, scalar_prefetch = 0 : i64, scratch_operands = 0 : i64, tpu.core_type = #tpu.core_type<tc>, window_params = [{transform_indices = @transform_0, window_bounds = array<i64: 1, 1, 64>}, {transform_indices = @transform_1, window_bounds = array<i64: 32, 160>}, {transform_indices = @transform_2, window_bounds = array<i64: 64, 160>}, {pipeline_mode = #tpu.pipeline_mode<synchronous>, transform_indices = @transform_3, window_bounds = array<i64: 160, 160>}, {pipeline_mode = #tpu.pipeline_mode<synchronous>, transform_indices = @transform_4, window_bounds = array<i64: 160, 416>}, {pipeline_mode = #tpu.pipeline_mode<synchronous>, transform_indices = @transform_5, window_bounds = array<i64: 128, 64>}, {pipeline_mode = #tpu.pipeline_mode<synchronous>, transform_indices = @transform_6, window_bounds = array<i64: 8, 160>}, {transform_indices = @transform_7, window_bounds = array<i64: 32, 160>}]} {
    %0 = tpu.iota {dimensions = array<i32: 0>} : vector<32x64xi32>
    %1 = tpu.iota {dimensions = array<i32: 1>} : vector<32x64xi32>
    %c3_i32 = arith.constant 3 : i32
    %2 = vector.broadcast %c3_i32 : i32 to vector<32x64xi32>
    %3 = arith.shrsi %0, %2 : vector<32x64xi32>
    %c4_i32 = arith.constant 4 : i32
    %4 = vector.broadcast %c4_i32 : i32 to vector<32x64xi32>
    %5 = arith.shrsi %1, %4 : vector<32x64xi32>
    %6 = arith.cmpi eq, %3, %5 : vector<32x64xi32>
    %c7_i32 = arith.constant 7 : i32
    %7 = vector.broadcast %c7_i32 : i32 to vector<32x64xi32>
    %8 = arith.andi %0, %7 : vector<32x64xi32>
    %c0 = arith.constant 0 : index
    %c0_0 = arith.constant 0 : index
    %c0_1 = arith.constant 0 : index
    %9 = vector.load %arg1[%c0, %c0_0, %c0_1] : memref<1x1x64xi32, #tpu.memory_space<vmem>>, vector<1x1x64xi32>
    %10 = vector.shape_cast %9 : vector<1x1x64xi32> to vector<1x64xi32>
    %11 = vector.broadcast %10 : vector<1x64xi32> to vector<32x64xi32>
    %12 = arith.cmpi eq, %8, %11 : vector<32x64xi32>
    %13 = arith.andi %6, %12 : vector<32x64xi1>
    %14 = arith.extui %13 : vector<32x64xi1> to vector<32x64xi32>
    %15 = arith.sitofp %14 : vector<32x64xi32> to vector<32x64xf32>
    %c0_2 = arith.constant 0 : index
    %c0_3 = arith.constant 0 : index
    %16 = vector.load %arg3[%c0_2, %c0_3] : memref<64x160xf32, #tpu.memory_space<vmem>>, vector<64x160xf32>
    %cst = arith.constant dense<0.000000e+00> : vector<32x160xf32>
    %17 = tpu.matmul %15, %16, %cst {dimension_numbers = #tpu.dot_dimension_numbers<[1], [0], [0], [1], [0, 0, 1, 1], [], []>} : vector<32x64xf32>, vector<64x160xf32>, vector<32x160xf32> -> vector<32x160xf32>
    %c0_4 = arith.constant 0 : index
    %c0_5 = arith.constant 0 : index
    %18 = vector.load %arg4[%c0_4, %c0_5] : memref<160x160xf32, #tpu.memory_space<vmem>>, vector<160x160xf32>
    %cst_6 = arith.constant dense<0.000000e+00> : vector<32x160xf32>
    %19 = tpu.matmul %17, %18, %cst_6 {dimension_numbers = #tpu.dot_dimension_numbers<[1], [0], [0], [1], [0, 0, 1, 1], [], []>} : vector<32x160xf32>, vector<160x160xf32>, vector<32x160xf32> -> vector<32x160xf32>
    %c0_7 = arith.constant 0 : index
    %c0_8 = arith.constant 0 : index
    %20 = vector.load %arg7[%c0_7, %c0_8] : memref<8x160xf32, #tpu.memory_space<vmem>>, vector<1x160xf32>
    %21 = vector.broadcast %20 : vector<1x160xf32> to vector<32x160xf32>
    %22 = arith.addf %19, %21 : vector<32x160xf32>
    %23 = tpu.iota {dimensions = array<i32: 1>} : vector<32x160xi32>
    %c128_i32 = arith.constant 128 : i32
    %24 = vector.broadcast %c128_i32 : i32 to vector<32x160xi32>
    %25 = arith.cmpi sge, %23, %24 : vector<32x160xi32>
    %c0_9 = arith.constant 0 : index
    %c0_10 = arith.constant 0 : index
    %26 = vector.load %arg2[%c0_9, %c0_10] : memref<32x160xf32, #tpu.memory_space<vmem>>, vector<32x160xf32>
    %27 = arith.negf %22 : vector<32x160xf32>
    %28 = math.exp %27 : vector<32x160xf32>
    %cst_11 = arith.constant 1.000000e+00 : f32
    %29 = vector.broadcast %cst_11 : f32 to vector<32x160xf32>
    %30 = arith.addf %29, %28 : vector<32x160xf32>
    %31 = arith.divf %29, %30 : vector<32x160xf32>
    %cst_12 = arith.constant 1.000000e+00 : f32
    %32 = vector.broadcast %cst_12 : f32 to vector<32x160xf32>
    %33 = arith.select %25, %31, %32 : vector<32x160xi1>, vector<32x160xf32>
    %34 = arith.mulf %22, %33 : vector<32x160xf32>
    %35 = arith.addf %26, %34 : vector<32x160xf32>
    %c0_13 = arith.constant 0 : index
    %c0_14 = arith.constant 0 : index
    %36 = vector.load %arg5[%c0_13, %c0_14] : memref<160x416xf32, #tpu.memory_space<vmem>>, vector<160x416xf32>
    %cst_15 = arith.constant dense<0.000000e+00> : vector<32x416xf32>
    %37 = tpu.matmul %35, %36, %cst_15 {dimension_numbers = #tpu.dot_dimension_numbers<[1], [0], [0], [1], [0, 0, 1, 1], [], []>} : vector<32x160xf32>, vector<160x416xf32>, vector<32x416xf32> -> vector<32x416xf32>
    %38 = vector.extract_strided_slice %37 {offsets = [0, 0], sizes = [32, 128], strides = [1, 1]} : vector<32x416xf32> to vector<32x128xf32>
    %39 = vector.extract_strided_slice %37 {offsets = [0, 128], sizes = [32, 128], strides = [1, 1]} : vector<32x416xf32> to vector<32x128xf32>
    %40 = arith.mulf %38, %39 : vector<32x128xf32>
    %c0_16 = arith.constant 0 : index
    %c0_17 = arith.constant 0 : index
    %41 = vector.load %arg6[%c0_16, %c0_17] : memref<128x64xf32, #tpu.memory_space<vmem>>, vector<128x64xf32>
    %cst_18 = arith.constant dense<0.000000e+00> : vector<32x64xf32>
    %42 = tpu.matmul %40, %41, %cst_18 {dimension_numbers = #tpu.dot_dimension_numbers<[1], [0], [0], [1], [0, 0, 1, 1], [], []>} : vector<32x128xf32>, vector<128x64xf32>, vector<32x64xf32> -> vector<32x64xf32>
    %c1 = arith.constant 1 : index
    %c0_19 = arith.constant 0 : index
    %43 = vector.load %arg7[%c1, %c0_19] : memref<8x160xf32, #tpu.memory_space<vmem>>, vector<1x64xf32>
    %44 = vector.broadcast %43 : vector<1x64xf32> to vector<32x64xf32>
    %45 = arith.addf %42, %44 : vector<32x64xf32>
    %cst_20 = arith.constant dense<0xFF800000> : vector<32xf32>
    %46 = vector.multi_reduction <maximumf>, %45, %cst_20 [1] : vector<32x64xf32> to vector<32xf32>
    %47 = vector.shape_cast %46 : vector<32xf32> to vector<32x1xf32>
    %48 = vector.broadcast %47 : vector<32x1xf32> to vector<32x64xf32>
    %49 = arith.subf %45, %48 : vector<32x64xf32>
    %50 = math.exp %49 : vector<32x64xf32>
    %cst_21 = arith.constant dense<0.000000e+00> : vector<32xf32>
    %51 = vector.multi_reduction <add>, %50, %cst_21 [1] : vector<32x64xf32> to vector<32xf32>
    %52 = vector.shape_cast %51 : vector<32xf32> to vector<32x1xf32>
    %53 = tpu.reciprocal %52 {approx = true} : vector<32x1xf32> -> vector<32x1xf32>
    %54 = vector.broadcast %53 : vector<32x1xf32> to vector<32x64xf32>
    %55 = arith.mulf %50, %54 : vector<32x64xf32>
    %56 = vector.extract_strided_slice %55 {offsets = [0, 0], sizes = [32, 32], strides = [1, 1]} : vector<32x64xf32> to vector<32x32xf32>
    %57 = vector.extract_strided_slice %55 {offsets = [0, 32], sizes = [32, 32], strides = [1, 1]} : vector<32x64xf32> to vector<32x32xf32>
    %58 = tpu.concatenate %57, %57, %57, %57 in 1 : vector<32x32xf32>, vector<32x32xf32>, vector<32x32xf32>, vector<32x32xf32> -> vector<32x128xf32>
    %c3 = arith.constant 3 : index
    %c0_22 = arith.constant 0 : index
    %59 = vector.load %arg7[%c3, %c0_22] : memref<8x160xf32, #tpu.memory_space<vmem>>, vector<1x128xf32>
    %60 = vector.broadcast %59 : vector<1x128xf32> to vector<32x128xf32>
    %61 = arith.mulf %58, %60 : vector<32x128xf32>
    %62 = vector.extract_strided_slice %37 {offsets = [0, 256], sizes = [32, 128], strides = [1, 1]} : vector<32x416xf32> to vector<32x128xf32>
    %63 = arith.mulf %61, %62 : vector<32x128xf32>
    %64 = vector.extract_strided_slice %37 {offsets = [0, 384], sizes = [32, 32], strides = [1, 1]} : vector<32x416xf32> to vector<32x32xf32>
    %c2 = arith.constant 2 : index
    %c0_23 = arith.constant 0 : index
    %65 = vector.load %arg7[%c2, %c0_23] : memref<8x160xf32, #tpu.memory_space<vmem>>, vector<1x32xf32>
    %66 = vector.broadcast %65 : vector<1x32xf32> to vector<32x32xf32>
    %67 = arith.addf %64, %66 : vector<32x32xf32>
    %68 = arith.negf %67 : vector<32x32xf32>
    %69 = math.exp %68 : vector<32x32xf32>
    %cst_24 = arith.constant 1.000000e+00 : f32
    %70 = vector.broadcast %cst_24 : f32 to vector<32x32xf32>
    %71 = arith.addf %70, %69 : vector<32x32xf32>
    %72 = arith.divf %70, %71 : vector<32x32xf32>
    %73 = arith.mulf %67, %72 : vector<32x32xf32>
    %74 = arith.mulf %56, %73 : vector<32x32xf32>
    %75 = vector.extract_strided_slice %35 {offsets = [0, 0], sizes = [32, 128], strides = [1, 1]} : vector<32x160xf32> to vector<32x128xf32>
    %76 = arith.addf %75, %63 : vector<32x128xf32>
    %c0_25 = arith.constant 0 : index
    %c0_26 = arith.constant 0 : index
    %77 = vector.load %arg8[%c0_25, %c0_26] : memref<32x160xf32, #tpu.memory_space<vmem>>, vector<32x128xf32>
    tpu.vector_store %arg8[%c0_25, %c0_26], %76 {strides = array<i32>} : memref<32x160xf32, #tpu.memory_space<vmem>>, vector<32x128xf32>,
    %78 = vector.extract_strided_slice %35 {offsets = [0, 128], sizes = [32, 32], strides = [1, 1]} : vector<32x160xf32> to vector<32x32xf32>
    %79 = arith.addf %78, %74 : vector<32x32xf32>
    %c0_27 = arith.constant 0 : index
    %c128 = arith.constant 128 : index
    %80 = vector.load %arg8[%c0_27, %c128] : memref<32x160xf32, #tpu.memory_space<vmem>>, vector<32x32xf32>
    tpu.vector_store %arg8[%c0_27, %c128], %79 {strides = array<i32>} : memref<32x160xf32, #tpu.memory_space<vmem>>, vector<32x32xf32>,
    return
  }
  func.func @transform_0(%arg0: i32) -> (i32, i32, i32) {
    %c0_i32 = arith.constant 0 : i32
    %c0_i32_0 = arith.constant 0 : i32
    %c0_i32_1 = arith.constant 0 : i32
    return %arg0, %c0_i32, %c0_i32_0 : i32, i32, i32
  }
  func.func @transform_1(%arg0: i32) -> (i32, i32) {
    %c0_i32 = arith.constant 0 : i32
    %c0_i32_0 = arith.constant 0 : i32
    return %arg0, %c0_i32 : i32, i32
  }
  func.func @transform_2(%arg0: i32) -> (i32, i32) {
    %c0_i32 = arith.constant 0 : i32
    %c0_i32_0 = arith.constant 0 : i32
    return %arg0, %c0_i32 : i32, i32
  }
  func.func @transform_3(%arg0: i32) -> (i32, i32) {
    %c0_i32 = arith.constant 0 : i32
    %c0_i32_0 = arith.constant 0 : i32
    %c0_i32_1 = arith.constant 0 : i32
    return %c0_i32, %c0_i32_0 : i32, i32
  }
  func.func @transform_4(%arg0: i32) -> (i32, i32) {
    %c0_i32 = arith.constant 0 : i32
    %c0_i32_0 = arith.constant 0 : i32
    %c0_i32_1 = arith.constant 0 : i32
    return %c0_i32, %c0_i32_0 : i32, i32
  }
  func.func @transform_5(%arg0: i32) -> (i32, i32) {
    %c0_i32 = arith.constant 0 : i32
    %c0_i32_0 = arith.constant 0 : i32
    %c0_i32_1 = arith.constant 0 : i32
    return %c0_i32, %c0_i32_0 : i32, i32
  }
  func.func @transform_6(%arg0: i32) -> (i32, i32) {
    %c0_i32 = arith.constant 0 : i32
    %c0_i32_0 = arith.constant 0 : i32
    %c0_i32_1 = arith.constant 0 : i32
    return %c0_i32, %c0_i32_0 : i32, i32
  }
  func.func @transform_7(%arg0: i32) -> (i32, i32) {
    %c0_i32 = arith.constant 0 : i32
    %c0_i32_0 = arith.constant 0 : i32
    return %arg0, %c0_i32 : i32, i32
  }
}

</mosaic_0001>

<llo_original>
// kernel: squeeze.1
$region0: #{squeeze.1}
  %s0 = inlined_call_operand.vmem [shape: s32[16,16], index: 0, kind: input, shape index: {}]
  %s1 = inlined_call_operand.vmem [shape: s32[4,1,64], index: 1, kind: output, shape index: {}]
  $region1: #{squeeze.1} parent=0
    #allocation0 [shape = 'u8[4096]{0}', space=vmem, size = 0x1000, scoped, tag = 'scoped mem for output reshape']
    %v2 = vld [vmem:[%s0] ss:$4 sm:$0xf]
    %vm3 = vcmask 130048
    %4 = vst.msk [vmem:[#allocation0] sm:$0xf] %vm3, %v2
    %s5 = scalar_lea.vmem %s0, 3
    %v6 = vld [vmem:[%s5] ss:$4 sm:$0xf]
    %7 = vrot.lane.b32.xlu0 %v6, 48
    %v8 = vpop.permute.xlu0 %7
    %vm9 = vcmask 523648
    %10 = vst.msk [vmem:[#allocation0] sm:$0xf] %vm9, %v8
    %s11 = scalar_lea.vmem %s0, 2
    %v12 = vld [vmem:[%s11] ss:$4 sm:$0xf]
    %13 = vrot.lane.b32.xlu0 %v12, 32
    %v14 = vpop.permute.xlu0 %13
    %vm15 = vcmask 392448
    %16 = vst.msk [vmem:[#allocation0] sm:$0xf] %vm15, %v14
    %s17 = scalar_lea.vmem %s0, 1
    %v18 = vld [vmem:[%s17] ss:$4 sm:$0xf]
    %19 = vrot.lane.b32.xlu0 %v18, 16
    %v20 = vpop.permute.xlu0 %19
    %vm21 = vcmask 261248
    %22 = vst.msk [vmem:[#allocation0] sm:$0xf] %vm21, %v20
    %s24 = sshll.u32 1, 4
    %s25 = ssub.s32 %s24, 1
    %v27 = vld [vmem:[#allocation0] sm:%s25]
    %s28 = sshll.u32 1, 4
    %s29 = ssub.s32 %s28, 1
    %30 = vst [vmem:[%s1] sm:%s29] %v27

// kernel: update_forward.1
$region0: #{update_forward.1}
  #allocation0 [shape = 'u32[]', space=smem, size = 0x4, offset = 0x4, fixed_abs, tag = 'smem constant byte address 0x4 - core index']
  #allocation1 [shape = 'u32[144,128]{1,0:T(1,128)}', space=vmem, size = 0x12000, scoped, tag = 'internal scratch']
  %s0 = inlined_call_operand.vmem [shape: s32[4,1,64], index: 0, kind: input, shape index: {}]
  %s1 = inlined_call_operand.vmem [shape: f32[128,160], index: 1, kind: input, shape index: {}]
  %s2 = inlined_call_operand.vmem [shape: f32[256,160], index: 2, kind: input, shape index: {}]
  %s3 = inlined_call_operand.vmem [shape: f32[160,160], index: 3, kind: input, shape index: {}]
  %s4 = inlined_call_operand.vmem [shape: f32[160,416], index: 4, kind: input, shape index: {}]
  %s5 = inlined_call_operand.vmem [shape: f32[128,64], index: 5, kind: input, shape index: {}]
  %s6 = inlined_call_operand.vmem [shape: f32[8,160], index: 6, kind: input, shape index: {}]
  %s7 = inlined_call_operand.vmem [shape: f32[128,160], index: 7, kind: output, shape index: {}]
  %s8 = sld [smem:[#allocation0]]
  $region61: #{update_forward.1} parent=0
    _
  %s10 = ssub.s32 1, %s8
  %s11 = scalar_select 0, %s10, %s8
  loop: start=0, step=1, limit=6
  $region2: #{update_forward.1} parent=0 // loop_pre_header
    _
  $region3: #{update_forward.1} parent=0 // loop_header
    %s13 = sphi 0, %s17
    %p14 = scmp.ge.s32.totalorder %s13, 6
    %s23 = sphi 0, %s25
    %s26 = sphi 0, %s23
    %s27 = sphi 0, %s26
    %s43 = sphi 0, %s27
    %s49 = sphi 0, %s51
    %s52 = sphi 0, %s49
    %s53 = sphi 0, %s52
    %s69 = sphi 0, %s53
    %s75 = sphi 0, %s77
    %s78 = sphi 0, %s75
    %s79 = sphi 0, %s78
    %s95 = sphi 0, %s79
    %s99 = sphi 0, %s99
    %s101 = sphi 0, %s99
    %s102 = sphi 0, %s101
    %s116 = sphi 0, %s102
    %s120 = sphi 0, %s120
    %s122 = sphi 0, %s120
    %s123 = sphi 0, %s122
    %s137 = sphi 0, %s123
    %s141 = sphi 0, %s141
    %s143 = sphi 0, %s141
    %s144 = sphi 0, %s143
    %s158 = sphi 0, %s144
    %s162 = sphi 0, %s162
    %s164 = sphi 0, %s162
    %s165 = sphi 0, %s164
    %s179 = sphi 0, %s165
    %s185 = sphi 0, %s187
    %s188 = sphi 0, %s185
    %s189 = sphi 0, %s188
    %s205 = sphi 0, %s189
  $region4: #{update_forward.1} parent=0 // loop_header_branch
    %16 = sbr.rel (%p14) target = $region8
  $region5: #{update_forward.1} parent=0 // loop_body
    %s18 = ssub.s32 %s13, 1
    %s19 = ssub.s32 %s13, 2
    %s20 = sadd.s32 %s13, 1
    %s21 = ssub.s32 %s13, %s20
    %p22 = scmp.eq.s32.totalorder %s21, 0
    %s24 = sadd.s32 %s23, 1
    %s25 = scalar_select %p22, %s23, %s24
    %p28 = pneg %p22
    %p29 = scmp.eq.s32.totalorder %s13, 3
    %p30 = por %p28, %p29
    %p31 = scmp.ne.s32.totalorder %s23, %s26
    %p32 = scmp.eq.s32.totalorder %s13, 0
    %p33 = por %p31, %p32
    %p34 = scmp.ne.s32.totalorder %s23, %s26
    %p35 = scmp.eq.s32.totalorder %s18, 3
    %p36 = por %p34, %p35
    %p37 = scmp.ne.s32.totalorder %s26, %s27
    %p38 = scmp.eq.s32.totalorder %s18, 0
    %p39 = por %p37, %p38
    %p40 = scmp.ne.s32.totalorder %s26, %s27
    %p41 = scmp.eq.s32.totalorder %s19, 3
    %p42 = por %p40, %p41
    %p44 = scmp.ne.s32.totalorder %s27, %s43
    %p45 = scmp.eq.s32.totalorder %s19, 0
    %p46 = por %p44, %p45
    %s47 = ssub.s32 %s13, %s20
    %p48 = scmp.eq.s32.totalorder %s47, 0
    %s50 = sadd.s32 %s49, 1
    %s51 = scalar_select %p48, %s49, %s50
    %p54 = pneg %p48
    %p55 = scmp.eq.s32.totalorder %s13, 3
    %p56 = por %p54, %p55
    %p57 = scmp.ne.s32.totalorder %s49, %s52
    %p58 = scmp.eq.s32.totalorder %s13, 0
    %p59 = por %p57, %p58
    %p60 = scmp.ne.s32.totalorder %s49, %s52
    %p61 = scmp.eq.s32.totalorder %s18, 3
    %p62 = por %p60, %p61
    %p63 = scmp.ne.s32.totalorder %s52, %s53
    %p64 = scmp.eq.s32.totalorder %s18, 0
    %p65 = por %p63, %p64
    %p66 = scmp.ne.s32.totalorder %s52, %s53
    %p67 = scmp.eq.s32.totalorder %s19, 3
    %p68 = por %p66, %p67
    %p70 = scmp.ne.s32.totalorder %s53, %s69
    %p71 = scmp.eq.s32.totalorder %s19, 0
    %p72 = por %p70, %p71
    %s73 = ssub.s32 %s13, %s20
    %p74 = scmp.eq.s32.totalorder %s73, 0
    %s76 = sadd.s32 %s75, 1
    %s77 = scalar_select %p74, %s75, %s76
    %p80 = pneg %p74
    %p81 = scmp.eq.s32.totalorder %s13, 3
    %p82 = por %p80, %p81
    %p83 = scmp.ne.s32.totalorder %s75, %s78
    %p84 = scmp.eq.s32.totalorder %s13, 0
    %p85 = por %p83, %p84
    %p86 = scmp.ne.s32.totalorder %s75, %s78
    %p87 = scmp.eq.s32.totalorder %s18, 3
    %p88 = por %p86, %p87
    %p89 = scmp.ne.s32.totalorder %s78, %s79
    %p90 = scmp.eq.s32.totalorder %s18, 0
    %p91 = por %p89, %p90
    %p92 = scmp.ne.s32.totalorder %s78, %s79
    %p93 = scmp.eq.s32.totalorder %s19, 3
    %p94 = por %p92, %p93
    %p96 = scmp.ne.s32.totalorder %s79, %s95
    %p97 = scmp.eq.s32.totalorder %s19, 0
    %p98 = por %p96, %p97
    %s100 = sadd.s32 %s99, 1
    %p103 = scmp.eq.s32.totalorder %s13, 3
    %p104 = scmp.ne.s32.totalorder %s99, %s101
    %p105 = scmp.eq.s32.totalorder %s13, 0
    %p106 = por %p104, %p105
    %p107 = scmp.ne.s32.totalorder %s99, %s101
    %p108 = scmp.eq.s32.totalorder %s18, 3
    %p109 = por %p107, %p108
    %p110 = scmp.ne.s32.totalorder %s101, %s102
    %p111 = scmp.eq.s32.totalorder %s18, 0
    %p112 = por %p110, %p111
    %p113 = scmp.ne.s32.totalorder %s101, %s102
    %p114 = scmp.eq.s32.totalorder %s19, 3
    %p115 = por %p113, %p114
    %p117 = scmp.ne.s32.totalorder %s102, %s116
    %p118 = scmp.eq.s32.totalorder %s19, 0
    %p119 = por %p117, %p118
    %s121 = sadd.s32 %s120, 1
    %p124 = scmp.eq.s32.totalorder %s13, 3
    %p125 = scmp.ne.s32.totalorder %s120, %s122
    %p126 = scmp.eq.s32.totalorder %s13, 0
    %p127 = por %p125, %p126
    %p128 = scmp.ne.s32.totalorder %s120, %s122
    %p129 = scmp.eq.s32.totalorder %s18, 3
    %p130 = por %p128, %p129
    %p131 = scmp.ne.s32.totalorder %s122, %s123
    %p132 = scmp.eq.s32.totalorder %s18, 0
    %p133 = por %p131, %p132
    %p134 = scmp.ne.s32.totalorder %s122, %s123
    %p135 = scmp.eq.s32.totalorder %s19, 3
    %p136 = por %p134, %p135
    %p138 = scmp.ne.s32.totalorder %s123, %s137
    %p139 = scmp.eq.s32.totalorder %s19, 0
    %p140 = por %p138, %p139
    %s142 = sadd.s32 %s141, 1
    %p145 = scmp.eq.s32.totalorder %s13, 3
    %p146 = scmp.ne.s32.totalorder %s141, %s143
    %p147 = scmp.eq.s32.totalorder %s13, 0
    %p148 = por %p146, %p147
    %p149 = scmp.ne.s32.totalorder %s141, %s143
    %p150 = scmp.eq.s32.totalorder %s18, 3
    %p151 = por %p149, %p150
    %p152 = scmp.ne.s32.totalorder %s143, %s144
    %p153 = scmp.eq.s32.totalorder %s18, 0
    %p154 = por %p152, %p153
    %p155 = scmp.ne.s32.totalorder %s143, %s144
    %p156 = scmp.eq.s32.totalorder %s19, 3
    %p157 = por %p155, %p156
    %p159 = scmp.ne.s32.totalorder %s144, %s158
    %p160 = scmp.eq.s32.totalorder %s19, 0
    %p161 = por %p159, %p160
    %s163 = sadd.s32 %s162, 1
    %p166 = scmp.eq.s32.totalorder %s13, 3
    %p167 = scmp.ne.s32.totalorder %s162, %s164
    %p168 = scmp.eq.s32.totalorder %s13, 0
    %p169 = por %p167, %p168
    %p170 = scmp.ne.s32.totalorder %s162, %s164
    %p171 = scmp.eq.s32.totalorder %s18, 3
    %p172 = por %p170, %p171
    %p173 = scmp.ne.s32.totalorder %s164, %s165
    %p174 = scmp.eq.s32.totalorder %s18, 0
    %p175 = por %p173, %p174
    %p176 = scmp.ne.s32.totalorder %s164, %s165
    %p177 = scmp.eq.s32.totalorder %s19, 3
    %p178 = por %p176, %p177
    %p180 = scmp.ne.s32.totalorder %s165, %s179
    %p181 = scmp.eq.s32.totalorder %s19, 0
    %p182 = por %p180, %p181
    %s183 = ssub.s32 %s13, %s20
    %p184 = scmp.eq.s32.totalorder %s183, 0
    %s186 = sadd.s32 %s185, 1
    %s187 = scalar_select %p184, %s185, %s186
    %p190 = pneg %p184
    %p191 = scmp.eq.s32.totalorder %s13, 3
    %p192 = por %p190, %p191
    %p193 = scmp.ne.s32.totalorder %s185, %s188
    %p194 = scmp.eq.s32.totalorder %s13, 0
    %p195 = por %p193, %p194
    %p196 = scmp.ne.s32.totalorder %s185, %s188
    %p197 = scmp.eq.s32.totalorder %s18, 3
    %p198 = por %p196, %p197
    %p199 = scmp.ne.s32.totalorder %s188, %s189
    %p200 = scmp.eq.s32.totalorder %s18, 0
    %p201 = por %p199, %p200
    %p202 = scmp.ne.s32.totalorder %s188, %s189
    %p203 = scmp.eq.s32.totalorder %s19, 3
    %p204 = por %p202, %p203
    %p206 = scmp.ne.s32.totalorder %s189, %s205
    %p207 = scmp.eq.s32.totalorder %s19, 0
    %p208 = por %p206, %p207
    %p209 = scmp.le.s32.totalorder 1, %s13
    %p210 = scmp.lt.s32.totalorder %s13, 5
    %p211 = pnand %p209, %p210
    %p212 = pneg %p211
    // Predicated region
    $region9: #{update_forward.1} parent=5 // pred_check
      _
    $region10: #{update_forward.1} parent=5 // pred_check_branch
      %214 = sbr.rel (%p211) target = $region12
    $region11: #{update_forward.1} parent=5 // pred_region
      %s215 = ssub.s32 %s13, 1
      // Predicated region
      $region13: #{update_forward.1} parent=11 // pred_check
        %p216 = pneg %p112
      $region14: #{update_forward.1} parent=11 // pred_check_branch
        %218 = sbr.rel (%p216) target = $region16
      $region15: #{update_forward.1} parent=11 // pred_region
        _
      $region16: #{update_forward.1} parent=11 // pred_fallthru
        _
      // Predicated region
      $region17: #{update_forward.1} parent=11 // pred_check
        %p219 = pneg %p133
      $region18: #{update_forward.1} parent=11 // pred_check_branch
        %221 = sbr.rel (%p219) target = $region20
      $region19: #{update_forward.1} parent=11 // pred_region
        _
      $region20: #{update_forward.1} parent=11 // pred_fallthru
        _
      // Predicated region
      $region21: #{update_forward.1} parent=11 // pred_check
        %p222 = pneg %p154
      $region22: #{update_forward.1} parent=11 // pred_check_branch
        %224 = sbr.rel (%p222) target = $region24
      $region23: #{update_forward.1} parent=11 // pred_region
        _
      $region24: #{update_forward.1} parent=11 // pred_fallthru
        _
      // Predicated region
      $region25: #{update_forward.1} parent=11 // pred_check
        %p225 = pneg %p175
      $region26: #{update_forward.1} parent=11 // pred_check_branch
        %227 = sbr.rel (%p225) target = $region28
      $region27: #{update_forward.1} parent=11 // pred_region
        _
      $region28: #{update_forward.1} parent=11 // pred_fallthru
        _
    $region12: #{update_forward.1} parent=5 // pred_fallthru
      _
    %p228 = scmp.lt.s32.totalorder %s13, 4
    // Predicated region
    $region29: #{update_forward.1} parent=5 // pred_check
      %p229 = pneg %p228
    $region30: #{update_forward.1} parent=5 // pred_check_branch
      %231 = sbr.rel (%p229) target = $region32
    $region31: #{update_forward.1} parent=5 // pred_region
      // Predicated region
      $region33: #{update_forward.1} parent=31 // pred_check
        %p232 = pneg %p33
      $region34: #{update_forward.1} parent=31 // pred_check_branch
        %234 = sbr.rel (%p232) target = $region36
      $region35: #{update_forward.1} parent=31 // pred_region
        %p235 = scmp.lt.s32.totalorder %s13, 3
        %s236 = scalar_select %p235, %s13, 3
        %s237 = scalar_lea.vmem %s0, %s236
      $region36: #{update_forward.1} parent=31 // pred_fallthru
        _
      // Predicated region
      $region37: #{update_forward.1} parent=31 // pred_check
        %p238 = pneg %p59
      $region38: #{update_forward.1} parent=31 // pred_check_branch
        %240 = sbr.rel (%p238) target = $region40
      $region39: #{update_forward.1} parent=31 // pred_region
        %s241 = smul.u32 4, %s13
        %p242 = scmp.lt.s32.totalorder %s241, 15
        %s243 = scalar_select %p242, %s241, 15
        %s244 = smul.addr %s243, 2
        %s245 = smul.addr %s244, 8
        %s246 = scalar_lea.vmem %s1, %s245
        %s247 = smul.u32 4, %s13
      $region40: #{update_forward.1} parent=31 // pred_fallthru
        _
      // Predicated region
      $region41: #{update_forward.1} parent=31 // pred_check
        %p248 = pneg %p85
      $region42: #{update_forward.1} parent=31 // pred_check_branch
        %250 = sbr.rel (%p248) target = $region44
      $region43: #{update_forward.1} parent=31 // pred_region
        %s251 = smul.u32 8, %s13
        %p252 = scmp.lt.s32.totalorder %s251, 31
        %s253 = scalar_select %p252, %s251, 31
        %s254 = smul.addr %s253, 2
        %s255 = smul.addr %s254, 8
        %s256 = scalar_lea.vmem %s2, %s255
        %s257 = smul.u32 8, %s13
      $region44: #{update_forward.1} parent=31 // pred_fallthru
        _
    $region32: #{update_forward.1} parent=5 // pred_fallthru
      _
    %p258 = scmp.le.s32.totalorder 1, %s13
    %p259 = scmp.lt.s32.totalorder %s13, 5
    %p260 = pnand %p258, %p259
    %p261 = pneg %p260
    // Predicated region
    $region45: #{update_forward.1} parent=5 // pred_check
      _
    $region46: #{update_forward.1} parent=5 // pred_check_branch
      %263 = sbr.rel (%p260) target = $region48
    $region47: #{update_forward.1} parent=5 // pred_region
      %s264 = ssub.s32 %s13, 1
      %p265 = scmp.lt.s32.totalorder %s18, 3
      %s266 = scalar_select %p265, %s18, 3
      %s267 = scalar_lea.vmem %s0, %s266
      %p268 = pneg %p39
      %p269 = pneg %p36
      %s270 = smul.u32 4, %s18
      %p271 = scmp.lt.s32.totalorder %s270, 15
      %s272 = scalar_select %p271, %s270, 15
      %s273 = smul.addr %s272, 2
      %s274 = smul.addr %s273, 8
      %s275 = scalar_lea.vmem %s1, %s274
      %p276 = pneg %p65
      %p277 = pneg %p62
      %s278 = smul.u32 8, %s18
      %p279 = scmp.lt.s32.totalorder %s278, 31
      %s280 = scalar_select %p279, %s278, 31
      %s281 = smul.addr %s280, 2
      %s282 = smul.addr %s281, 8
      %s283 = scalar_lea.vmem %s2, %s282
      %p284 = pneg %p91
      %p285 = pneg %p88
      %p286 = pneg %p112
      %p287 = pneg %p109
      %p288 = pneg %p133
      %p289 = pneg %p130
      %p290 = pneg %p154
      %p291 = pneg %p151
      %p292 = pneg %p175
      %p293 = pneg %p172
      %p294 = pneg %p201
      %p295 = pneg %p198
      %s296 = smul.u32 4, %s18
      %p297 = scmp.lt.s32.totalorder %s296, 15
      %s298 = scalar_select %p297, %s296, 15
      %s299 = smul.addr %s298, 2
      %s300 = smul.addr %s299, 8
      %s301 = scalar_lea.vmem %s7, %s300
      %p302 = scmp.lt.s32.totalorder %s18, 3
      %s303 = scalar_select %p302, %s18, 3
      %s304 = scalar_lea.vmem %s0, %s303
      %s305 = smul.u32 4, %s18
      %p306 = scmp.lt.s32.totalorder %s305, 15
      %s307 = scalar_select %p306, %s305, 15
      %s308 = smul.addr %s307, 2
      %s309 = smul.addr %s308, 8
      %s310 = scalar_lea.vmem %s1, %s309
      %s311 = smul.u32 4, %s18
      %s312 = smul.u32 8, %s18
      %p313 = scmp.lt.s32.totalorder %s312, 31
      %s314 = scalar_select %p313, %s312, 31
      %s315 = smul.addr %s314, 2
      %s316 = smul.addr %s315, 8
      %s317 = scalar_lea.vmem %s2, %s316
      %s318 = smul.u32 8, %s18
      %s319 = smul.u32 4, %s18
      %p320 = scmp.lt.s32.totalorder %s319, 15
      %s321 = scalar_select %p320, %s319, 15
      %s322 = smul.addr %s321, 2
      %s323 = smul.addr %s322, 8
      %s324 = scalar_lea.vmem %s7, %s323
      %s325 = smul.u32 4, %s18
      %v326 = vlaneseq
      %v327 = vshrl.u32 %v326, 7
      %v328 = vadd.s32 %v327, 8
      %v329 = vadd.s32 %v327, 16
      %v330 = vadd.s32 %v327, 24
      %v331 = vlaneseq
      %v332 = vand.u32 %v331, 127
      %v333 = vshra.s32 %v327, 3
      %v334 = vshra.s32 %v328, 3
      %v335 = vshra.s32 %v329, 3
      %v336 = vshra.s32 %v330, 3
      %v337 = vshra.s32 %v332, 4
      %vm338 = vcmp.eq.s32.totalorder %v333, %v337
      %vm339 = vcmp.eq.s32.totalorder %v334, %v337
      %vm340 = vcmp.eq.s32.totalorder %v335, %v337
      %vm341 = vcmp.eq.s32.totalorder %v336, %v337
      %v342 = vand.u32 %v327, 7
      %v343 = vand.u32 %v328, 7
      %v344 = vand.u32 %v329, 7
      %v345 = vand.u32 %v330, 7
      %v346 = vld [vmem:[%s304] sm:$0x1]
      %v347 = vlaneseq
      %v348 = vshrl.u32 %v347, 7
      %v349 = vsub.s32 0, %v348
      %v350 = vrot.slane %v346, %v349
      %vm351 = vcmp.eq.s32.totalorder %v342, %v350
      %vm352 = vcmp.eq.s32.totalorder %v343, %v350
      %vm353 = vcmp.eq.s32.totalorder %v344, %v350
      %vm354 = vcmp.eq.s32.totalorder %v345, %v350
      %vm355 = vmand %vm338, %vm351
      %vm356 = vmand %vm339, %vm352
      %vm357 = vmand %vm340, %vm353
      %vm358 = vmand %vm341, %vm354
      %v359 = vsel %vm355, 1, 0
      %v360 = vsel %vm356, 1, 0
      %v361 = vsel %vm357, 1, 0
      %v362 = vsel %vm358, 1, 0
      %v363 = vcvt.s32.f32 %v359
      %v364 = vcvt.s32.f32 %v360
      %v365 = vcvt.s32.f32 %v361
      %v366 = vcvt.s32.f32 %v362
      %v367 = vld [vmem:[%s317] sm:$0xff]
      %v368 = vld [vmem:[%s317 + $0x8] sm:$0xff]
      %v369 = vld [vmem:[%s317 + $0x10] sm:$0xff]
      %v370 = vld [vmem:[%s317 + $0x18] sm:$0xff]
      %v371 = vld [vmem:[%s317 + $0x20] sm:$0xff]
      %v372 = vld [vmem:[%s317 + $0x28] sm:$0xff]
      %v373 = vld [vmem:[%s317 + $0x30] sm:$0xff]
      %v374 = vld [vmem:[%s317 + $0x38] sm:$0xff]
      %v375 = vld [vmem:[%s317 + $0x40] sm:$0xff]
      %v376 = vld [vmem:[%s317 + $0x48] sm:$0xff]
      %v377 = vld [vmem:[%s317 + $0x50] sm:$0xff]
      %v378 = vld [vmem:[%s317 + $0x58] sm:$0xff]
      %v379 = vld [vmem:[%s317 + $0x60] sm:$0xff]
      %v380 = vld [vmem:[%s317 + $0x68] sm:$0xff]
      %v381 = vld [vmem:[%s317 + $0x70] sm:$0xff]
      %v382 = vld [vmem:[%s317 + $0x78] sm:$0xff]
      %vm383 = vcmask 523264
      %v385 = vsel %vm383, %v363, 0
      %v388 = vsel %vm383, %v364, 0
      %v391 = vsel %vm383, %v365, 0
      %v394 = vsel %vm383, %v366, 0
      %396 = vmatprep.subr.mxu0 0.0
      %397 = vmatpush1.msra.mxu0 0.0
      %398 = vmatprep.subr.mxu0 0.0
      %399 = vmatpush1.msra.mxu0 0.0
      %400 = vmatprep.subr.mxu0 0.0
      %401 = vmatpush1.msra.mxu0 0.0
      %402 = vmatprep.subr.mxu0 0.0
      %403 = vmatpush1.msra.mxu0 0.0
      %404 = vmatprep.subr.mxu0 0.0
      %405 = vmatpush1.msra.mxu0 0.0
      %406 = vmatprep.subr.mxu0 0.0
      %407 = vmatpush1.msra.mxu0 0.0
      %408 = vmatprep.subr.mxu0 0.0
      %409 = vmatpush1.msra.mxu0 0.0
      %410 = vmatprep.subr.mxu0 0.0
      %411 = vmatpush1.msra.mxu0 0.0
      %412 = vmatprep.subr.mxu0 %v382
      %413 = vmatpush1.msra.mxu0 %v381
      %414 = vmatprep.subr.mxu0 %v380
      %415 = vmatpush1.msra.mxu0 %v379
      %416 = vmatprep.subr.mxu0 %v378
      %417 = vmatpush1.msra.mxu0 %v377
      %418 = vmatprep.subr.mxu0 %v376
      %419 = vmatpush1.msra.mxu0 %v375
      %420 = vmatprep.subr.mxu0 %v374
      %421 = vmatpush1.msra.mxu0 %v373
      %422 = vmatprep.subr.mxu0 %v372
      %423 = vmatpush1.msra.mxu0 %v371
      %424 = vmatprep.subr.mxu0 %v370
      %425 = vmatpush1.msra.mxu0 %v369
      %426 = vmatprep.subr.mxu0 %v368
      %427 = vmatpush1.msra.mxu0 %v367
      %428 = vmatprep.subr.mxu0 0.0
      %429 = vmatpush2.msra.mxu0 0.0
      %430 = vmatprep.subr.mxu0 0.0
      %431 = vmatpush2.msra.mxu0 0.0
      %432 = vmatprep.subr.mxu0 0.0
      %433 = vmatpush2.msra.mxu0 0.0
      %434 = vmatprep.subr.mxu0 0.0
      %435 = vmatpush2.msra.mxu0 0.0
      %436 = vmatprep.subr.mxu0 0.0
      %437 = vmatpush2.msra.mxu0 0.0
      %438 = vmatprep.subr.mxu0 0.0
      %439 = vmatpush2.msra.mxu0 0.0
      %440 = vmatprep.subr.mxu0 0.0
      %441 = vmatpush2.msra.mxu0 0.0
      %442 = vmatprep.subr.mxu0 0.0
      %443 = vmatpush2.msra.mxu0 0.0
      %444 = vmatprep.subr.mxu0 0.0
      %445 = vmatpush2.msra.mxu0 0.0
      %446 = vmatprep.subr.mxu0 0.0
      %447 = vmatpush2.msra.mxu0 0.0
      %448 = vmatprep.subr.mxu0 0.0
      %449 = vmatpush2.msra.mxu0 0.0
      %450 = vmatprep.subr.mxu0 0.0
      %451 = vmatpush2.msra.mxu0 0.0
      %452 = vmatprep.subr.mxu0 0.0
      %453 = vmatpush2.msra.mxu0 0.0
      %454 = vmatprep.subr.mxu0 0.0
      %455 = vmatpush2.msra.mxu0 0.0
      %456 = vmatprep.subr.mxu0 0.0
      %457 = vmatpush2.msra.mxu0 0.0
      %458 = vmatprep.subr.mxu0 0.0
      %459 = vmatpush2.msra.mxu0 0.0
      %460 = vmatprep.mubr.f32.mxu0 0.0
      %461 = vmatmul.mubr.f32.gmra.mxu0 %v385
      %v462 = vpop.f32.mrf.mxu0
      %v463 = vadd.f32 0.0, %v462
      %v464 = vpop.f32.mrf.mxu0
      %v465 = vadd.f32 0.0, %v464
      %466 = vmatprep.mubr.f32.mxu0 0.0
      %467 = vmatmul.mubr.f32.gmra.mxu0 %v388
      %v468 = vpop.f32.mrf.mxu0
      %v469 = vadd.f32 0.0, %v468
      %v470 = vpop.f32.mrf.mxu0
      %v471 = vadd.f32 0.0, %v470
      %472 = vmatprep.mubr.f32.mxu0 0.0
      %473 = vmatmul.mubr.f32.gmra.mxu0 %v391
      %v474 = vpop.f32.mrf.mxu0
      %v475 = vadd.f32 0.0, %v474
      %v476 = vpop.f32.mrf.mxu0
      %v477 = vadd.f32 0.0, %v476
      %478 = vmatprep.mubr.f32.mxu0 0.0
      %479 = vmatmul.mubr.f32.gmra.mxu0 %v394
      %v480 = vpop.f32.mrf.mxu0
      %v481 = vadd.f32 0.0, %v480
      %v482 = vpop.f32.mrf.mxu0
      %v483 = vadd.f32 0.0, %v482
      %484 = vdwg.mxu0
      %v485 = vld [vmem:[%s3] sm:$0xff]
      %v486 = vld [vmem:[%s3 + $0x8] sm:$0xff]
      %v487 = vld [vmem:[%s3 + $0x10] sm:$0xff]
      %v488 = vld [vmem:[%s3 + $0x18] sm:$0xff]
      %v489 = vld [vmem:[%s3 + $0x20] sm:$0xff]
      %v490 = vld [vmem:[%s3 + $0x28] sm:$0xff]
      %v491 = vld [vmem:[%s3 + $0x30] sm:$0xff]
      %v492 = vld [vmem:[%s3 + $0x38] sm:$0xff]
      %v493 = vld [vmem:[%s3 + $0x40] sm:$0xff]
      %v494 = vld [vmem:[%s3 + $0x48] sm:$0xff]
      %v495 = vld [vmem:[%s3 + $0x50] sm:$0xff]
      %v496 = vld [vmem:[%s3 + $0x58] sm:$0xff]
      %v497 = vld [vmem:[%s3 + $0x60] sm:$0xff]
      %v498 = vld [vmem:[%s3 + $0x68] sm:$0xff]
      %v499 = vld [vmem:[%s3 + $0x70] sm:$0xff]
      %v500 = vld [vmem:[%s3 + $0x78] sm:$0xff]
      %v501 = vld [vmem:[%s3 + $0x80] sm:$0xff]
      %v502 = vld [vmem:[%s3 + $0x88] sm:$0xff]
      %v503 = vld [vmem:[%s3 + $0x90] sm:$0xff]
      %v504 = vld [vmem:[%s3 + $0x98] sm:$0xff]
      %v505 = vld [vmem:[%s3 + $0xa0] sm:$0xff]
      %v506 = vld [vmem:[%s3 + $0xa8] sm:$0xff]
      %v507 = vld [vmem:[%s3 + $0xb0] sm:$0xff]
      %v508 = vld [vmem:[%s3 + $0xb8] sm:$0xff]
      %v509 = vld [vmem:[%s3 + $0xc0] sm:$0xff]
      %v510 = vld [vmem:[%s3 + $0xc8] sm:$0xff]
      %v511 = vld [vmem:[%s3 + $0xd0] sm:$0xff]
      %v512 = vld [vmem:[%s3 + $0xd8] sm:$0xff]
      %v513 = vld [vmem:[%s3 + $0xe0] sm:$0xff]
      %v514 = vld [vmem:[%s3 + $0xe8] sm:$0xff]
      %v515 = vld [vmem:[%s3 + $0xf0] sm:$0xff]
      %v516 = vld [vmem:[%s3 + $0xf8] sm:$0xff]
      %v517 = vld [vmem:[%s3 + $0x100] sm:$0xff]
      %v518 = vld [vmem:[%s3 + $0x108] sm:$0xff]
      %v519 = vld [vmem:[%s3 + $0x110] sm:$0xff]
      %v520 = vld [vmem:[%s3 + $0x118] sm:$0xff]
      %v521 = vld [vmem:[%s3 + $0x120] sm:$0xff]
      %v522 = vld [vmem:[%s3 + $0x128] sm:$0xff]
      %v523 = vld [vmem:[%s3 + $0x130] sm:$0xff]
      %v524 = vld [vmem:[%s3 + $0x138] sm:$0xff]
      %v525 = vld [vmem:[%s6] ss:$8 sm:$0x3]
      %v527 = vlaneseq
      %v528 = vshrl.u32 %v527, 7
      %v529 = vsub.s32 0, %v528
      %v530 = vrot.slane %v525, %v529
      %v531 = vlaneseq
      %v532 = vshrl.u32 %v531, 7
      %v533 = vsub.s32 1, %v532
      %v534 = vrot.slane %v525, %v533
      %vm537 = vcmask 261120
      %v539 = vsel %vm537, %v465, 0
      %v542 = vsel %vm537, %v471, 0
      %v545 = vsel %vm537, %v477, 0
      %v548 = vsel %vm537, %v483, 0
      %550 = vmatprep.subr.mxu0 %v516
      %551 = vmatpush1.msra.mxu0 %v515
      %552 = vmatprep.subr.mxu0 %v514
      %553 = vmatpush1.msra.mxu0 %v513
      %554 = vmatprep.subr.mxu0 %v512
      %555 = vmatpush1.msra.mxu0 %v511
      %556 = vmatprep.subr.mxu0 %v510
      %557 = vmatpush1.msra.mxu0 %v509
      %558 = vmatprep.subr.mxu0 %v508
      %559 = vmatpush1.msra.mxu0 %v507
      %560 = vmatprep.subr.mxu0 %v506
      %561 = vmatpush1.msra.mxu0 %v505
      %562 = vmatprep.subr.mxu0 %v504
      %563 = vmatpush1.msra.mxu0 %v503
      %564 = vmatprep.subr.mxu0 %v502
      %565 = vmatpush1.msra.mxu0 %v501
      %566 = vmatprep.subr.mxu0 %v500
      %567 = vmatpush1.msra.mxu0 %v499
      %568 = vmatprep.subr.mxu0 %v498
      %569 = vmatpush1.msra.mxu0 %v497
      %570 = vmatprep.subr.mxu0 %v496
      %571 = vmatpush1.msra.mxu0 %v495
      %572 = vmatprep.subr.mxu0 %v494
      %573 = vmatpush1.msra.mxu0 %v493
      %574 = vmatprep.subr.mxu0 %v492
      %575 = vmatpush1.msra.mxu0 %v491
      %576 = vmatprep.subr.mxu0 %v490
      %577 = vmatpush1.msra.mxu0 %v489
      %578 = vmatprep.subr.mxu0 %v488
      %579 = vmatpush1.msra.mxu0 %v487
      %580 = vmatprep.subr.mxu0 %v486
      %581 = vmatpush1.msra.mxu0 %v485
      %582 = vmatprep.subr.mxu0 0.0
      %583 = vmatpush2.msra.mxu0 0.0
      %584 = vmatprep.subr.mxu0 0.0
      %585 = vmatpush2.msra.mxu0 0.0
      %586 = vmatprep.subr.mxu0 0.0
      %587 = vmatpush2.msra.mxu0 0.0
      %588 = vmatprep.subr.mxu0 0.0
      %589 = vmatpush2.msra.mxu0 0.0
      %590 = vmatprep.subr.mxu0 0.0
      %591 = vmatpush2.msra.mxu0 0.0
      %592 = vmatprep.subr.mxu0 0.0
      %593 = vmatpush2.msra.mxu0 0.0
      %594 = vmatprep.subr.mxu0 0.0
      %595 = vmatpush2.msra.mxu0 0.0
      %596 = vmatprep.subr.mxu0 0.0
      %597 = vmatpush2.msra.mxu0 0.0
      %598 = vmatprep.subr.mxu0 0.0
      %599 = vmatpush2.msra.mxu0 0.0
      %600 = vmatprep.subr.mxu0 0.0
      %601 = vmatpush2.msra.mxu0 0.0
      %602 = vmatprep.subr.mxu0 0.0
      %603 = vmatpush2.msra.mxu0 0.0
      %604 = vmatprep.subr.mxu0 0.0
      %605 = vmatpush2.msra.mxu0 0.0
      %606 = vmatprep.subr.mxu0 %v524
      %607 = vmatpush2.msra.mxu0 %v523
      %608 = vmatprep.subr.mxu0 %v522
      %609 = vmatpush2.msra.mxu0 %v521
      %610 = vmatprep.subr.mxu0 %v520
      %611 = vmatpush2.msra.mxu0 %v519
      %612 = vmatprep.subr.mxu0 %v518
      %613 = vmatpush2.msra.mxu0 %v517
      %614 = vmatprep.mubr.f32.mxu0 %v539
      %615 = vmatmul.mubr.f32.gmra.mxu0 %v463
      %v616 = vpop.f32.mrf.mxu0
      %v617 = vadd.f32 %v530, %v616
      %v618 = vpop.f32.mrf.mxu0
      %v619 = vadd.f32 %v534, %v618
      %620 = vmatprep.mubr.f32.mxu0 %v542
      %621 = vmatmul.mubr.f32.gmra.mxu0 %v469
      %v622 = vpop.f32.mrf.mxu0
      %v623 = vadd.f32 %v530, %v622
      %v624 = vpop.f32.mrf.mxu0
      %v625 = vadd.f32 %v534, %v624
      %626 = vmatprep.mubr.f32.mxu0 %v545
      %627 = vmatmul.mubr.f32.gmra.mxu0 %v475
      %v628 = vpop.f32.mrf.mxu0
      %v629 = vadd.f32 %v530, %v628
      %v630 = vpop.f32.mrf.mxu0
      %v631 = vadd.f32 %v534, %v630
      %632 = vmatprep.mubr.f32.mxu0 %v548
      %633 = vmatmul.mubr.f32.gmra.mxu0 %v481
      %v634 = vpop.f32.mrf.mxu0
      %v635 = vadd.f32 %v530, %v634
      %v636 = vpop.f32.mrf.mxu0
      %v637 = vadd.f32 %v534, %v636
      %638 = vdwg.mxu0
      %v639 = vadd.s32 %v332, 128
      %vm640 = vcmp.ge.s32.totalorder %v332, 128
      %vm641 = vcmp.ge.s32.totalorder %v639, 128
      %v642 = vld [vmem:[%s310] sm:$0xff]
      %v643 = vld [vmem:[%s310 + $0x8] sm:$0xff]
      %v644 = vld [vmem:[%s310 + $0x10] sm:$0xff]
      %v645 = vld [vmem:[%s310 + $0x18] sm:$0xff]
      %v646 = vld [vmem:[%s310 + $0x20] sm:$0xff]
      %v647 = vld [vmem:[%s310 + $0x28] sm:$0xff]
      %v648 = vld [vmem:[%s310 + $0x30] sm:$0xff]
      %v649 = vld [vmem:[%s310 + $0x38] sm:$0xff]
      %v650 = vxor.u32 %v617, 2147483648
      %v651 = vxor.u32 %v619, 2147483648
      %v652 = vxor.u32 %v623, 2147483648
      %v653 = vxor.u32 %v625, 2147483648
      %v654 = vxor.u32 %v629, 2147483648
      %v655 = vxor.u32 %v631, 2147483648
      %v656 = vxor.u32 %v635, 2147483648
      %v657 = vxor.u32 %v637, 2147483648
      %v658 = vmul.f32 %v650, 1.442695
      %v659 = vpow.pop %v658
      %v660 = vmul.f32 %v651, 1.442695
      %v661 = vpow.pop %v660
      %v662 = vmul.f32 %v652, 1.442695
      %v663 = vpow.pop %v662
      %v664 = vmul.f32 %v653, 1.442695
      %v665 = vpow.pop %v664
      %v666 = vmul.f32 %v654, 1.442695
      %v667 = vpow.pop %v666
      %v668 = vmul.f32 %v655, 1.442695
      %v669 = vpow.pop %v668
      %v670 = vmul.f32 %v656, 1.442695
      %v671 = vpow.pop %v670
      %v672 = vmul.f32 %v657, 1.442695
      %v673 = vpow.pop %v672
      %v674 = vadd.f32 %v659, 1.0
      %v675 = vadd.f32 %v661, 1.0
      %v676 = vadd.f32 %v663, 1.0
      %v677 = vadd.f32 %v665, 1.0
      %v678 = vadd.f32 %v667, 1.0
      %v679 = vadd.f32 %v669, 1.0
      %v680 = vadd.f32 %v671, 1.0
      %v681 = vadd.f32 %v673, 1.0
      %v682 = vrcp.pop %v674
      %v683 = vmul.f32 1.0, %v682
      %v684 = vrcp.pop %v675
      %v685 = vmul.f32 1.0, %v684
      %v686 = vrcp.pop %v676
      %v687 = vmul.f32 1.0, %v686
      %v688 = vrcp.pop %v677
      %v689 = vmul.f32 1.0, %v688
      %v690 = vrcp.pop %v678
      %v691 = vmul.f32 1.0, %v690
      %v692 = vrcp.pop %v679
      %v693 = vmul.f32 1.0, %v692
      %v694 = vrcp.pop %v680
      %v695 = vmul.f32 1.0, %v694
      %v696 = vrcp.pop %v681
      %v697 = vmul.f32 1.0, %v696
      %v698 = vsel %vm640, %v683, 1.0
      %v699 = vsel %vm641, %v685, 1.0
      %v700 = vsel %vm640, %v687, 1.0
      %v701 = vsel %vm641, %v689, 1.0
      %v702 = vsel %vm640, %v691, 1.0
      %v703 = vsel %vm641, %v693, 1.0
      %v704 = vsel %vm640, %v695, 1.0
      %v705 = vsel %vm641, %v697, 1.0
      %v706 = vmul.f32 %v617, %v698
      %v707 = vmul.f32 %v619, %v699
      %v708 = vmul.f32 %v623, %v700
      %v709 = vmul.f32 %v625, %v701
      %v710 = vmul.f32 %v629, %v702
      %v711 = vmul.f32 %v631, %v703
      %v712 = vmul.f32 %v635, %v704
      %v713 = vmul.f32 %v637, %v705
      %v714 = vadd.f32 %v642, %v706
      %v715 = vadd.f32 %v643, %v707
      %v716 = vadd.f32 %v644, %v708
      %v717 = vadd.f32 %v645, %v709
      %v718 = vadd.f32 %v646, %v710
      %v719 = vadd.f32 %v647, %v711
      %v720 = vadd.f32 %v648, %v712
      %v721 = vadd.f32 %v649, %v713
      %v722 = vld [vmem:[%s4] sm:$0xff]
      %v723 = vld [vmem:[%s4 + $0x8] sm:$0xff]
      %v724 = vld [vmem:[%s4 + $0x10] sm:$0xff]
      %v725 = vld [vmem:[%s4 + $0x18] sm:$0xff]
      %v726 = vld [vmem:[%s4 + $0x20] sm:$0xff]
      %v727 = vld [vmem:[%s4 + $0x28] sm:$0xff]
      %v728 = vld [vmem:[%s4 + $0x30] sm:$0xff]
      %v729 = vld [vmem:[%s4 + $0x38] sm:$0xff]
      %v730 = vld [vmem:[%s4 + $0x40] sm:$0xff]
      %v731 = vld [vmem:[%s4 + $0x48] sm:$0xff]
      %v732 = vld [vmem:[%s4 + $0x50] sm:$0xff]
      %v733 = vld [vmem:[%s4 + $0x58] sm:$0xff]
      %v734 = vld [vmem:[%s4 + $0x60] sm:$0xff]
      %v735 = vld [vmem:[%s4 + $0x68] sm:$0xff]
      %v736 = vld [vmem:[%s4 + $0x70] sm:$0xff]
      %v737 = vld [vmem:[%s4 + $0x78] sm:$0xff]
      %v738 = vld [vmem:[%s4 + $0x80] sm:$0xff]
      %v739 = vld [vmem:[%s4 + $0x88] sm:$0xff]
      %v740 = vld [vmem:[%s4 + $0x90] sm:$0xff]
      %v741 = vld [vmem:[%s4 + $0x98] sm:$0xff]
      %v742 = vld [vmem:[%s4 + $0xa0] sm:$0xff]
      %v743 = vld [vmem:[%s4 + $0xa8] sm:$0xff]
      %v744 = vld [vmem:[%s4 + $0xb0] sm:$0xff]
      %v745 = vld [vmem:[%s4 + $0xb8] sm:$0xff]
      %v746 = vld [vmem:[%s4 + $0xc0] sm:$0xff]
      %v747 = vld [vmem:[%s4 + $0xc8] sm:$0xff]
      %v748 = vld [vmem:[%s4 + $0xd0] sm:$0xff]
      %v749 = vld [vmem:[%s4 + $0xd8] sm:$0xff]
      %v750 = vld [vmem:[%s4 + $0xe0] sm:$0xff]
      %v751 = vld [vmem:[%s4 + $0xe8] sm:$0xff]
      %v752 = vld [vmem:[%s4 + $0xf0] sm:$0xff]
      %v753 = vld [vmem:[%s4 + $0xf8] sm:$0xff]
      %v754 = vld [vmem:[%s4 + $0x100] sm:$0xff]
      %v755 = vld [vmem:[%s4 + $0x108] sm:$0xff]
      %v756 = vld [vmem:[%s4 + $0x110] sm:$0xff]
      %v757 = vld [vmem:[%s4 + $0x118] sm:$0xff]
      %v758 = vld [vmem:[%s4 + $0x120] sm:$0xff]
      %v759 = vld [vmem:[%s4 + $0x128] sm:$0xff]
      %v760 = vld [vmem:[%s4 + $0x130] sm:$0xff]
      %v761 = vld [vmem:[%s4 + $0x138] sm:$0xff]
      %v762 = vld [vmem:[%s4 + $0x140] sm:$0xff]
      %v763 = vld [vmem:[%s4 + $0x148] sm:$0xff]
      %v764 = vld [vmem:[%s4 + $0x150] sm:$0xff]
      %v765 = vld [vmem:[%s4 + $0x158] sm:$0xff]
      %v766 = vld [vmem:[%s4 + $0x160] sm:$0xff]
      %v767 = vld [vmem:[%s4 + $0x168] sm:$0xff]
      %v768 = vld [vmem:[%s4 + $0x170] sm:$0xff]
      %v769 = vld [vmem:[%s4 + $0x178] sm:$0xff]
      %v770 = vld [vmem:[%s4 + $0x180] sm:$0xff]
      %v771 = vld [vmem:[%s4 + $0x188] sm:$0xff]
      %v772 = vld [vmem:[%s4 + $0x190] sm:$0xff]
      %v773 = vld [vmem:[%s4 + $0x198] sm:$0xff]
      %v774 = vld [vmem:[%s4 + $0x1a0] sm:$0xff]
      %v775 = vld [vmem:[%s4 + $0x1a8] sm:$0xff]
      %v776 = vld [vmem:[%s4 + $0x1b0] sm:$0xff]
      %v777 = vld [vmem:[%s4 + $0x1b8] sm:$0xff]
      %v778 = vld [vmem:[%s4 + $0x1c0] sm:$0xff]
      %v779 = vld [vmem:[%s4 + $0x1c8] sm:$0xff]
      %v780 = vld [vmem:[%s4 + $0x1d0] sm:$0xff]
      %v781 = vld [vmem:[%s4 + $0x1d8] sm:$0xff]
      %v782 = vld [vmem:[%s4 + $0x1e0] sm:$0xff]
      %v783 = vld [vmem:[%s4 + $0x1e8] sm:$0xff]
      %v784 = vld [vmem:[%s4 + $0x1f0] sm:$0xff]
      %v785 = vld [vmem:[%s4 + $0x1f8] sm:$0xff]
      %v786 = vld [vmem:[%s4 + $0x200] sm:$0xff]
      %v787 = vld [vmem:[%s4 + $0x208] sm:$0xff]
      %v788 = vld [vmem:[%s4 + $0x210] sm:$0xff]
      %v789 = vld [vmem:[%s4 + $0x218] sm:$0xff]
      %v790 = vld [vmem:[%s4 + $0x220] sm:$0xff]
      %v791 = vld [vmem:[%s4 + $0x228] sm:$0xff]
      %v792 = vld [vmem:[%s4 + $0x230] sm:$0xff]
      %v793 = vld [vmem:[%s4 + $0x238] sm:$0xff]
      %v794 = vld [vmem:[%s4 + $0x240] sm:$0xff]
      %v795 = vld [vmem:[%s4 + $0x248] sm:$0xff]
      %v796 = vld [vmem:[%s4 + $0x250] sm:$0xff]
      %v797 = vld [vmem:[%s4 + $0x258] sm:$0xff]
      %v798 = vld [vmem:[%s4 + $0x260] sm:$0xff]
      %v799 = vld [vmem:[%s4 + $0x268] sm:$0xff]
      %v800 = vld [vmem:[%s4 + $0x270] sm:$0xff]
      %v801 = vld [vmem:[%s4 + $0x278] sm:$0xff]
      %v803 = vsel %vm537, %v715, 0
      %v806 = vsel %vm537, %v717, 0
      %v809 = vsel %vm537, %v719, 0
      %v812 = vsel %vm537, %v721, 0
      %814 = vmatprep.subr.mxu0 %v783
      %815 = vmatpush1.msra.mxu0 %v782
      %816 = vmatprep.subr.mxu0 %v779
      %817 = vmatpush1.msra.mxu0 %v778
      %818 = vmatprep.subr.mxu0 %v775
      %819 = vmatpush1.msra.mxu0 %v774
      %820 = vmatprep.subr.mxu0 %v771
      %821 = vmatpush1.msra.mxu0 %v770
      %822 = vmatprep.subr.mxu0 %v767
      %823 = vmatpush1.msra.mxu0 %v766
      %824 = vmatprep.subr.mxu0 %v763
      %825 = vmatpush1.msra.mxu0 %v762
      %826 = vmatprep.subr.mxu0 %v759
      %827 = vmatpush1.msra.mxu0 %v758
      %828 = vmatprep.subr.mxu0 %v755
      %829 = vmatpush1.msra.mxu0 %v754
      %830 = vmatprep.subr.mxu0 %v751
      %831 = vmatpush1.msra.mxu0 %v750
      %832 = vmatprep.subr.mxu0 %v747
      %833 = vmatpush1.msra.mxu0 %v746
      %834 = vmatprep.subr.mxu0 %v743
      %835 = vmatpush1.msra.mxu0 %v742
      %836 = vmatprep.subr.mxu0 %v739
      %837 = vmatpush1.msra.mxu0 %v738
      %838 = vmatprep.subr.mxu0 %v735
      %839 = vmatpush1.msra.mxu0 %v734
      %840 = vmatprep.subr.mxu0 %v731
      %841 = vmatpush1.msra.mxu0 %v730
      %842 = vmatprep.subr.mxu0 %v727
      %843 = vmatpush1.msra.mxu0 %v726
      %844 = vmatprep.subr.mxu0 %v723
      %845 = vmatpush1.msra.mxu0 %v722
      %846 = vmatprep.subr.mxu0 0.0
      %847 = vmatpush2.msra.mxu0 0.0
      %848 = vmatprep.subr.mxu0 0.0
      %849 = vmatpush2.msra.mxu0 0.0
      %850 = vmatprep.subr.mxu0 0.0
      %851 = vmatpush2.msra.mxu0 0.0
      %852 = vmatprep.subr.mxu0 0.0
      %853 = vmatpush2.msra.mxu0 0.0
      %854 = vmatprep.subr.mxu0 0.0
      %855 = vmatpush2.msra.mxu0 0.0
      %856 = vmatprep.subr.mxu0 0.0
      %857 = vmatpush2.msra.mxu0 0.0
      %858 = vmatprep.subr.mxu0 0.0
      %859 = vmatpush2.msra.mxu0 0.0
      %860 = vmatprep.subr.mxu0 0.0
      %861 = vmatpush2.msra.mxu0 0.0
      %862 = vmatprep.subr.mxu0 0.0
      %863 = vmatpush2.msra.mxu0 0.0
      %864 = vmatprep.subr.mxu0 0.0
      %865 = vmatpush2.msra.mxu0 0.0
      %866 = vmatprep.subr.mxu0 0.0
      %867 = vmatpush2.msra.mxu0 0.0
      %868 = vmatprep.subr.mxu0 0.0
      %869 = vmatpush2.msra.mxu0 0.0
      %870 = vmatprep.subr.mxu0 %v799
      %871 = vmatpush2.msra.mxu0 %v798
      %872 = vmatprep.subr.mxu0 %v795
      %873 = vmatpush2.msra.mxu0 %v794
      %874 = vmatprep.subr.mxu0 %v791
      %875 = vmatpush2.msra.mxu0 %v790
      %876 = vmatprep.subr.mxu0 %v787
      %877 = vmatpush2.msra.mxu0 %v786
      %878 = vmatprep.mubr.f32.mxu0 %v803
      %879 = vmatmul.mubr.f32.gmra.mxu0 %v714
      %v880 = vpop.f32.mrf.mxu0
      %v881 = vadd.f32 0.0, %v880
      %v882 = vpop.f32.mrf.mxu0
      %v883 = vadd.f32 0.0, %v882
      %884 = vmatprep.mubr.f32.mxu0 %v806
      %885 = vmatmul.mubr.f32.gmra.mxu0 %v716
      %v886 = vpop.f32.mrf.mxu0
      %v887 = vadd.f32 0.0, %v886
      %v888 = vpop.f32.mrf.mxu0
      %v889 = vadd.f32 0.0, %v888
      %890 = vmatprep.mubr.f32.mxu0 %v809
      %891 = vmatmul.mubr.f32.gmra.mxu0 %v718
      %v892 = vpop.f32.mrf.mxu0
      %v893 = vadd.f32 0.0, %v892
      %v894 = vpop.f32.mrf.mxu0
      %v895 = vadd.f32 0.0, %v894
      %896 = vmatprep.mubr.f32.mxu0 %v812
      %897 = vmatmul.mubr.f32.gmra.mxu0 %v720
      %v898 = vpop.f32.mrf.mxu0
      %v899 = vadd.f32 0.0, %v898
      %v900 = vpop.f32.mrf.mxu0
      %v901 = vadd.f32 0.0, %v900
      %902 = vdwg.mxu0
      %903 = vmatprep.subr.mxu0 %v785
      %904 = vmatpush1.msra.mxu0 %v784
      %905 = vmatprep.subr.mxu0 %v781
      %906 = vmatpush1.msra.mxu0 %v780
      %907 = vmatprep.subr.mxu0 %v777
      %908 = vmatpush1.msra.mxu0 %v776
      %909 = vmatprep.subr.mxu0 %v773
      %910 = vmatpush1.msra.mxu0 %v772
      %911 = vmatprep.subr.mxu0 %v769
      %912 = vmatpush1.msra.mxu0 %v768
      %913 = vmatprep.subr.mxu0 %v765
      %914 = vmatpush1.msra.mxu0 %v764
      %915 = vmatprep.subr.mxu0 %v761
      %916 = vmatpush1.msra.mxu0 %v760
      %917 = vmatprep.subr.mxu0 %v757
      %918 = vmatpush1.msra.mxu0 %v756
      %919 = vmatprep.subr.mxu0 %v753
      %920 = vmatpush1.msra.mxu0 %v752
      %921 = vmatprep.subr.mxu0 %v749
      %922 = vmatpush1.msra.mxu0 %v748
      %923 = vmatprep.subr.mxu0 %v745
      %924 = vmatpush1.msra.mxu0 %v744
      %925 = vmatprep.subr.mxu0 %v741
      %926 = vmatpush1.msra.mxu0 %v740
      %927 = vmatprep.subr.mxu0 %v737
      %928 = vmatpush1.msra.mxu0 %v736
      %929 = vmatprep.subr.mxu0 %v733
      %930 = vmatpush1.msra.mxu0 %v732
      %931 = vmatprep.subr.mxu0 %v729
      %932 = vmatpush1.msra.mxu0 %v728
      %933 = vmatprep.subr.mxu0 %v725
      %934 = vmatpush1.msra.mxu0 %v724
      %935 = vmatprep.subr.mxu0 0.0
      %936 = vmatpush2.msra.mxu0 0.0
      %937 = vmatprep.subr.mxu0 0.0
      %938 = vmatpush2.msra.mxu0 0.0
      %939 = vmatprep.subr.mxu0 0.0
      %940 = vmatpush2.msra.mxu0 0.0
      %941 = vmatprep.subr.mxu0 0.0
      %942 = vmatpush2.msra.mxu0 0.0
      %943 = vmatprep.subr.mxu0 0.0
      %944 = vmatpush2.msra.mxu0 0.0
      %945 = vmatprep.subr.mxu0 0.0
      %946 = vmatpush2.msra.mxu0 0.0
      %947 = vmatprep.subr.mxu0 0.0
      %948 = vmatpush2.msra.mxu0 0.0
      %949 = vmatprep.subr.mxu0 0.0
      %950 = vmatpush2.msra.mxu0 0.0
      %951 = vmatprep.subr.mxu0 0.0
      %952 = vmatpush2.msra.mxu0 0.0
      %953 = vmatprep.subr.mxu0 0.0
      %954 = vmatpush2.msra.mxu0 0.0
      %955 = vmatprep.subr.mxu0 0.0
      %956 = vmatpush2.msra.mxu0 0.0
      %957 = vmatprep.subr.mxu0 0.0
      %958 = vmatpush2.msra.mxu0 0.0
      %959 = vmatprep.subr.mxu0 %v801
      %960 = vmatpush2.msra.mxu0 %v800
      %961 = vmatprep.subr.mxu0 %v797
      %962 = vmatpush2.msra.mxu0 %v796
      %963 = vmatprep.subr.mxu0 %v793
      %964 = vmatpush2.msra.mxu0 %v792
      %965 = vmatprep.subr.mxu0 %v789
      %966 = vmatpush2.msra.mxu0 %v788
      %967 = vmatprep.mubr.f32.mxu0 %v803
      %968 = vmatmul.mubr.f32.gmra.mxu0 %v714
      %v969 = vpop.f32.mrf.mxu0
      %v970 = vadd.f32 0.0, %v969
      %v971 = vpop.f32.mrf.mxu0
      %v972 = vadd.f32 0.0, %v971
      %973 = vmatprep.mubr.f32.mxu0 %v806
      %974 = vmatmul.mubr.f32.gmra.mxu0 %v716
      %v975 = vpop.f32.mrf.mxu0
      %v976 = vadd.f32 0.0, %v975
      %v977 = vpop.f32.mrf.mxu0
      %v978 = vadd.f32 0.0, %v977
      %979 = vmatprep.mubr.f32.mxu0 %v809
      %980 = vmatmul.mubr.f32.gmra.mxu0 %v718
      %v981 = vpop.f32.mrf.mxu0
      %v982 = vadd.f32 0.0, %v981
      %v983 = vpop.f32.mrf.mxu0
      %v984 = vadd.f32 0.0, %v983
      %985 = vmatprep.mubr.f32.mxu0 %v812
      %986 = vmatmul.mubr.f32.gmra.mxu0 %v720
      %v987 = vpop.f32.mrf.mxu0
      %v988 = vadd.f32 0.0, %v987
      %v989 = vpop.f32.mrf.mxu0
      %v990 = vadd.f32 0.0, %v989
      %991 = vdwg.mxu0
      %v992 = vmul.f32 %v881, %v883
      %v993 = vmul.f32 %v887, %v889
      %v994 = vmul.f32 %v893, %v895
      %v995 = vmul.f32 %v899, %v901
      %v996 = vld [vmem:[%s5] sm:$0xff]
      %v997 = vld [vmem:[%s5 + $0x8] sm:$0xff]
      %v998 = vld [vmem:[%s5 + $0x10] sm:$0xff]
      %v999 = vld [vmem:[%s5 + $0x18] sm:$0xff]
      %v1000 = vld [vmem:[%s5 + $0x20] sm:$0xff]
      %v1001 = vld [vmem:[%s5 + $0x28] sm:$0xff]
      %v1002 = vld [vmem:[%s5 + $0x30] sm:$0xff]
      %v1003 = vld [vmem:[%s5 + $0x38] sm:$0xff]
      %v1004 = vld [vmem:[%s5 + $0x40] sm:$0xff]
      %v1005 = vld [vmem:[%s5 + $0x48] sm:$0xff]
      %v1006 = vld [vmem:[%s5 + $0x50] sm:$0xff]
      %v1007 = vld [vmem:[%s5 + $0x58] sm:$0xff]
      %v1008 = vld [vmem:[%s5 + $0x60] sm:$0xff]
      %v1009 = vld [vmem:[%s5 + $0x68] sm:$0xff]
      %v1010 = vld [vmem:[%s5 + $0x70] sm:$0xff]
      %v1011 = vld [vmem:[%s5 + $0x78] sm:$0xff]
      %v1012 = vld [vmem:[%s6 + $0x1] ss:$0 sm:$0xff]
      %1013 = vmatprep.subr.mxu0 0.0
      %1014 = vmatpush1.msra.mxu0 %v1011
      %1015 = vmatprep.subr.mxu0 0.0
      %1016 = vmatpush1.msra.mxu0 %v1010
      %1017 = vmatprep.subr.mxu0 0.0
      %1018 = vmatpush1.msra.mxu0 %v1009
      %1019 = vmatprep.subr.mxu0 0.0
      %1020 = vmatpush1.msra.mxu0 %v1008
      %1021 = vmatprep.subr.mxu0 0.0
      %1022 = vmatpush1.msra.mxu0 %v1007
      %1023 = vmatprep.subr.mxu0 0.0
      %1024 = vmatpush1.msra.mxu0 %v1006
      %1025 = vmatprep.subr.mxu0 0.0
      %1026 = vmatpush1.msra.mxu0 %v1005
      %1027 = vmatprep.subr.mxu0 0.0
      %1028 = vmatpush1.msra.mxu0 %v1004
      %1029 = vmatprep.subr.mxu0 0.0
      %1030 = vmatpush1.msra.mxu0 %v1003
      %1031 = vmatprep.subr.mxu0 0.0
      %1032 = vmatpush1.msra.mxu0 %v1002
      %1033 = vmatprep.subr.mxu0 0.0
      %1034 = vmatpush1.msra.mxu0 %v1001
      %1035 = vmatprep.subr.mxu0 0.0
      %1036 = vmatpush1.msra.mxu0 %v1000
      %1037 = vmatprep.subr.mxu0 0.0
      %1038 = vmatpush1.msra.mxu0 %v999
      %1039 = vmatprep.subr.mxu0 0.0
      %1040 = vmatpush1.msra.mxu0 %v998
      %1041 = vmatprep.subr.mxu0 0.0
      %1042 = vmatpush1.msra.mxu0 %v997
      %1043 = vmatprep.subr.mxu0 0.0
      %1044 = vmatpush1.msra.mxu0 %v996
      %1045 = vmatprep.subr.mxu0 0.0
      %1046 = vmatpush2.msra.mxu0 0.0
      %1047 = vmatprep.subr.mxu0 0.0
      %1048 = vmatpush2.msra.mxu0 0.0
      %1049 = vmatprep.subr.mxu0 0.0
      %1050 = vmatpush2.msra.mxu0 0.0
      %1051 = vmatprep.subr.mxu0 0.0
      %1052 = vmatpush2.msra.mxu0 0.0
      %1053 = vmatprep.subr.mxu0 0.0
      %1054 = vmatpush2.msra.mxu0 0.0
      %1055 = vmatprep.subr.mxu0 0.0
      %1056 = vmatpush2.msra.mxu0 0.0
      %1057 = vmatprep.subr.mxu0 0.0
      %1058 = vmatpush2.msra.mxu0 0.0
      %1059 = vmatprep.subr.mxu0 0.0
      %1060 = vmatpush2.msra.mxu0 0.0
      %1061 = vmatprep.subr.mxu0 0.0
      %1062 = vmatpush2.msra.mxu0 0.0
      %1063 = vmatprep.subr.mxu0 0.0
      %1064 = vmatpush2.msra.mxu0 0.0
      %1065 = vmatprep.subr.mxu0 0.0
      %1066 = vmatpush2.msra.mxu0 0.0
      %1067 = vmatprep.subr.mxu0 0.0
      %1068 = vmatpush2.msra.mxu0 0.0
      %1069 = vmatprep.subr.mxu0 0.0
      %1070 = vmatpush2.msra.mxu0 0.0
      %1071 = vmatprep.subr.mxu0 0.0
      %1072 = vmatpush2.msra.mxu0 0.0
      %1073 = vmatprep.subr.mxu0 0.0
      %1074 = vmatpush2.msra.mxu0 0.0
      %1075 = vmatprep.subr.mxu0 0.0
      %1076 = vmatpush2.msra.mxu0 0.0
      %1077 = vmatprep.mubr.f32.mxu0 0.0
      %1078 = vmatmul.mubr.f32.gmra.mxu0 %v992
      %v1079 = vpop.f32.mrf.mxu0
      %v1080 = vadd.f32 %v1012, %v1079
      %v1081 = vpop.f32.mrf.mxu0
      %1082 = vmatprep.mubr.f32.mxu0 0.0
      %1083 = vmatmul.mubr.f32.gmra.mxu0 %v993
      %v1084 = vpop.f32.mrf.mxu0
      %v1085 = vadd.f32 %v1012, %v1084
      %v1086 = vpop.f32.mrf.mxu0
      %1087 = vmatprep.mubr.f32.mxu0 0.0
      %1088 = vmatmul.mubr.f32.gmra.mxu0 %v994
      %v1089 = vpop.f32.mrf.mxu0
      %v1090 = vadd.f32 %v1012, %v1089
      %v1091 = vpop.f32.mrf.mxu0
      %1092 = vmatprep.mubr.f32.mxu0 0.0
      %1093 = vmatmul.mubr.f32.gmra.mxu0 %v995
      %v1094 = vpop.f32.mrf.mxu0
      %v1095 = vadd.f32 %v1012, %v1094
      %v1096 = vpop.f32.mrf.mxu0
      %1097 = vdwg.mxu0
      %v1098 = vsel %vm383, %v1080, -inf
      %1099 = vmax.xlane.f32.xlu0 %v1098
      %v1100 = vpop.xlane.xlu0 %1099
      %v1101 = vsel %vm383, %v1085, -inf
      %1102 = vmax.xlane.f32.xlu0 %v1101
      %v1103 = vpop.xlane.xlu0 %1102
      %v1104 = vsel %vm383, %v1090, -inf
      %1105 = vmax.xlane.f32.xlu0 %v1104
      %v1106 = vpop.xlane.xlu0 %1105
      %v1107 = vsel %vm383, %v1095, -inf
      %1108 = vmax.xlane.f32.xlu0 %v1107
      %v1109 = vpop.xlane.xlu0 %1108
      %v1110 = vsub.f32 %v1080, %v1100
      %v1111 = vsub.f32 %v1085, %v1103
      %v1112 = vsub.f32 %v1090, %v1106
      %v1113 = vsub.f32 %v1095, %v1109
      %v1114 = vmul.f32 %v1110, 1.442695
      %v1115 = vpow.pop %v1114
      %v1116 = vmul.f32 %v1111, 1.442695
      %v1117 = vpow.pop %v1116
      %v1118 = vmul.f32 %v1112, 1.442695
      %v1119 = vpow.pop %v1118
      %v1120 = vmul.f32 %v1113, 1.442695
      %v1121 = vpow.pop %v1120
      %v1122 = vsel %vm383, %v1115, 0.0
      %1123 = vadd.xlane.f32.xlu0 %v1122
      %v1124 = vpop.xlane.xlu0 %1123
      %v1125 = vsel %vm383, %v1117, 0.0
      %1126 = vadd.xlane.f32.xlu0 %v1125
      %v1127 = vpop.xlane.xlu0 %1126
      %v1128 = vsel %vm383, %v1119, 0.0
      %1129 = vadd.xlane.f32.xlu0 %v1128
      %v1130 = vpop.xlane.xlu0 %1129
      %v1131 = vsel %vm383, %v1121, 0.0
      %1132 = vadd.xlane.f32.xlu0 %v1131
      %v1133 = vpop.xlane.xlu0 %1132
      %v1134 = vrcp.pop %v1124
      %v1135 = vrcp.pop %v1127
      %v1136 = vrcp.pop %v1130
      %v1137 = vrcp.pop %v1133
      %v1138 = vmul.f32 %v1115, %v1134
      %v1139 = vmul.f32 %v1117, %v1135
      %v1140 = vmul.f32 %v1119, %v1136
      %v1141 = vmul.f32 %v1121, %v1137
      %1146 = vrot.lane.b32.xlu0 %v1138, 96
      %v1147 = vpop.permute.xlu0 %1146
      %1148 = vrot.lane.b32.xlu0 %v1139, 96
      %v1149 = vpop.permute.xlu0 %1148
      %1150 = vrot.lane.b32.xlu0 %v1140, 96
      %v1151 = vpop.permute.xlu0 %1150
      %1152 = vrot.lane.b32.xlu0 %v1141, 96
      %v1153 = vpop.permute.xlu0 %1152
      %1158 = vrot.lane.b32.xlu0 %v1138, 32
      %v1159 = vpop.permute.xlu0 %1158
      %1160 = vrot.lane.b32.xlu0 %v1139, 32
      %v1161 = vpop.permute.xlu0 %1160
      %1162 = vrot.lane.b32.xlu0 %v1140, 32
      %v1163 = vpop.permute.xlu0 %1162
      %1164 = vrot.lane.b32.xlu0 %v1141, 32
      %v1165 = vpop.permute.xlu0 %1164
      %1170 = vrot.lane.b32.xlu0 %v1138, 64
      %v1171 = vpop.permute.xlu0 %1170
      %1172 = vrot.lane.b32.xlu0 %v1139, 64
      %v1173 = vpop.permute.xlu0 %1172
      %1174 = vrot.lane.b32.xlu0 %v1140, 64
      %v1175 = vpop.permute.xlu0 %1174
      %1176 = vrot.lane.b32.xlu0 %v1141, 64
      %v1177 = vpop.permute.xlu0 %1176
      %v1182 = vsel %vm537, %v1147, %v1138
      %v1183 = vsel %vm537, %v1149, %v1139
      %v1184 = vsel %vm537, %v1151, %v1140
      %v1185 = vsel %vm537, %v1153, %v1141
      %v1186 = vsel %vm383, %v1182, %v1159
      %v1187 = vsel %vm383, %v1183, %v1161
      %v1188 = vsel %vm383, %v1184, %v1163
      %v1189 = vsel %vm383, %v1185, %v1165
      %vm1190 = vcmask 785408
      %v1191 = vsel %vm1190, %v1186, %v1171
      %v1192 = vsel %vm1190, %v1187, %v1173
      %v1193 = vsel %vm1190, %v1188, %v1175
      %v1194 = vsel %vm1190, %v1189, %v1177
      %v1195 = vld [vmem:[%s6 + $0x3] ss:$0 sm:$0xff]
      %v1196 = vmul.f32 %v1191, %v1195
      %v1197 = vmul.f32 %v1192, %v1195
      %v1198 = vmul.f32 %v1193, %v1195
      %v1199 = vmul.f32 %v1194, %v1195
      %v1200 = vmul.f32 %v1196, %v970
      %v1201 = vmul.f32 %v1197, %v976
      %v1202 = vmul.f32 %v1198, %v982
      %v1203 = vmul.f32 %v1199, %v988
      %v1204 = vld [vmem:[%s6 + $0x2] ss:$0 sm:$0xff]
      %v1205 = vadd.f32 %v972, %v1204
      %v1206 = vadd.f32 %v978, %v1204
      %v1207 = vadd.f32 %v984, %v1204
      %v1208 = vadd.f32 %v990, %v1204
      %v1209 = vxor.u32 %v1205, 2147483648
      %v1210 = vxor.u32 %v1206, 2147483648
      %v1211 = vxor.u32 %v1207, 2147483648
      %v1212 = vxor.u32 %v1208, 2147483648
      %v1213 = vmul.f32 %v1209, 1.442695
      %v1214 = vpow.pop %v1213
      %v1215 = vmul.f32 %v1210, 1.442695
      %v1216 = vpow.pop %v1215
      %v1217 = vmul.f32 %v1211, 1.442695
      %v1218 = vpow.pop %v1217
      %v1219 = vmul.f32 %v1212, 1.442695
      %v1220 = vpow.pop %v1219
      %v1221 = vadd.f32 %v1214, 1.0
      %v1222 = vadd.f32 %v1216, 1.0
      %v1223 = vadd.f32 %v1218, 1.0
      %v1224 = vadd.f32 %v1220, 1.0
      %v1225 = vrcp.pop %v1221
      %v1226 = vmul.f32 1.0, %v1225
      %v1227 = vrcp.pop %v1222
      %v1228 = vmul.f32 1.0, %v1227
      %v1229 = vrcp.pop %v1223
      %v1230 = vmul.f32 1.0, %v1229
      %v1231 = vrcp.pop %v1224
      %v1232 = vmul.f32 1.0, %v1231
      %v1233 = vmul.f32 %v1205, %v1226
      %v1234 = vmul.f32 %v1206, %v1228
      %v1235 = vmul.f32 %v1207, %v1230
      %v1236 = vmul.f32 %v1208, %v1232
      %v1237 = vmul.f32 %v1138, %v1233
      %v1238 = vmul.f32 %v1139, %v1234
      %v1239 = vmul.f32 %v1140, %v1235
      %v1240 = vmul.f32 %v1141, %v1236
      %v1241 = vadd.f32 %v714, %v1200
      %v1242 = vadd.f32 %v716, %v1201
      %v1243 = vadd.f32 %v718, %v1202
      %v1244 = vadd.f32 %v720, %v1203
      %1245 = vst [vmem:[%s324] sm:$0xff] %v1241
      %1246 = vst [vmem:[%s324 + $0x10] sm:$0xff] %v1242
      %1247 = vst [vmem:[%s324 + $0x20] sm:$0xff] %v1243
      %1248 = vst [vmem:[%s324 + $0x30] sm:$0xff] %v1244
      %v1249 = vadd.f32 %v715, %v1237
      %v1250 = vadd.f32 %v717, %v1238
      %v1251 = vadd.f32 %v719, %v1239
      %v1252 = vadd.f32 %v721, %v1240
      %1253 = vst.msk [vmem:[%s324 + $0x8] sm:$0xff] %vm537, %v1249
      %1254 = vst.msk [vmem:[%s324 + $0x18] sm:$0xff] %vm537, %v1250
      %1255 = vst.msk [vmem:[%s324 + $0x28] sm:$0xff] %vm537, %v1251
      %1256 = vst.msk [vmem:[%s324 + $0x38] sm:$0xff] %vm537, %v1252
      %s1257 = smul.u32 4, %s18
      %p1258 = scmp.lt.s32.totalorder %s1257, 15
      %s1259 = scalar_select %p1258, %s1257, 15
      %s1260 = smul.addr %s1259, 2
      %s1261 = smul.addr %s1260, 8
      %s1262 = scalar_lea.vmem %s7, %s1261
      // Predicated region
      $region49: #{update_forward.1} parent=47 // pred_check
        %p1263 = pneg %p198
      $region50: #{update_forward.1} parent=47 // pred_check_branch
        %1265 = sbr.rel (%p1263) target = $region52
      $region51: #{update_forward.1} parent=47 // pred_region
        %s1266 = smul.u32 4, %s18
      $region52: #{update_forward.1} parent=47 // pred_fallthru
        _
    $region48: #{update_forward.1} parent=5 // pred_fallthru
      _
    %p1267 = scmp.le.s32.totalorder 2, %s13
    // Predicated region
    $region53: #{update_forward.1} parent=5 // pred_check
      %p1268 = pneg %p1267
    $region54: #{update_forward.1} parent=5 // pred_check_branch
      %1270 = sbr.rel (%p1268) target = $region56
    $region55: #{update_forward.1} parent=5 // pred_region
      %s1271 = ssub.s32 %s13, 2
      // Predicated region
      $region57: #{update_forward.1} parent=55 // pred_check
        %p1272 = pneg %p204
      $region58: #{update_forward.1} parent=55 // pred_check_branch
        %1274 = sbr.rel (%p1272) target = $region60
      $region59: #{update_forward.1} parent=55 // pred_region
        %s1275 = smul.u32 4, %s19
        %p1276 = scmp.lt.s32.totalorder %s1275, 15
        %s1277 = scalar_select %p1276, %s1275, 15
        %s1278 = smul.addr %s1277, 2
        %s1279 = smul.addr %s1278, 8
        %s1280 = scalar_lea.vmem %s7, %s1279
      $region60: #{update_forward.1} parent=55 // pred_fallthru
        _
    $region56: #{update_forward.1} parent=5 // pred_fallthru
      _
  $region6: #{update_forward.1} parent=0 // loop_footer
    %s17 = sadd.s32 1, %s13
  $region7: #{update_forward.1} parent=0 // loop_footer_branch
    %12 = sbr.rel target = $region3
  $region8: #{update_forward.1} parent=0 // loop_exit
    _

</llo_original>
